<compile_context>
chip_gen: v5e
topology: v5e:2x2
jax: 0.10.0
libtpu: 0.0.40
codegen_flags: <defaults>
</compile_context>

<pallas_src>
import math
from functools import partial

import jax
import jax.numpy as jnp
from jax.experimental import pallas as pl
from jax.experimental.pallas import tpu as pltpu

_INV_SQRT2 = 1.0 / math.sqrt(2.0)
_LN_EPS = 1e-5


def _layer_norm(x, w, b):
    mu = jnp.mean(x, axis=-1, keepdims=True)
    var = jnp.mean(x * x, axis=-1, keepdims=True) - mu * mu
    return (x - mu) * (jax.lax.rsqrt(var + _LN_EPS) * w) + b


def _class_block_kernel(num_heads, head_dim, n_valid,
                        x_ref,
                        n1w, n1b, n2w, n2b,
                        kw, kb, vw, vb, qw, qb, pw, pb,
                        f1w, f1b, f2w, f2b,
                        pool, expand,
                        o_ref):
    TB, N, C = x_ref.shape
    H = num_heads
    cdt = kw.dtype                      # bf16 matmul operands; fp32 accumulation everywhere

    x3 = x_ref[...].astype(jnp.float32)                               # (TB, N, C)

    # ---- norm1 over all tokens; cast to bf16 right away ----
    xn = _layer_norm(x3, n1w[...], n1b[...]).astype(cdt)              # (TB, N, C)
    xn2 = xn.reshape(TB * N, C)                                       # free: N % 8 == 0

    # ---- k / v projections (MXU M = TB*N) ----
    k = jnp.dot(xn2, kw[...], preferred_element_type=jnp.float32) + kb[...]   # (TB*N, C)
    v = jnp.dot(xn2, vw[...], preferred_element_type=jnp.float32) + vb[...]   # (TB*N, C)

    # ---- q projection on the class token only (scale pre-folded into qw/qb) ----
    q = jnp.dot(xn[:, 0, :], qw[...], preferred_element_type=jnp.float32) + qb[...]  # (TB, C)

    # ---- per-head scores: implicit q broadcast + bf16 0/1 head-pool matmul ----
    kq = k.reshape(TB, N, C) * q[:, None, :]                          # (TB, N, C)
    s = jnp.dot(kq.reshape(TB * N, C).astype(cdt), pool[...],
                preferred_element_type=jnp.float32)                   # (TB*N, H)
    s3 = s.reshape(TB, N, H)
    if n_valid < N:                                                   # mask padded tokens
        tok = jax.lax.broadcasted_iota(jnp.int32, (TB, N, H), 1)
        s3 = jnp.where(tok < n_valid, s3, -1e30)

    m = jnp.max(s3, axis=1, keepdims=True)                            # (TB, 1, H)
    p = jnp.exp(s3 - m)
    l = jnp.sum(p, axis=1, keepdims=True)                             # (TB, 1, H)
    attn = p * (1.0 / l)                                              # exact; l is tiny

    attn_full = jnp.dot(attn.reshape(TB * N, H).astype(cdt), expand[...],
                        preferred_element_type=jnp.float32)           # (TB*N, C)
    ctx = jnp.sum(attn_full.reshape(TB, N, C) * v.reshape(TB, N, C), axis=1)   # (TB, C)

    cls = jnp.dot(ctx.astype(cdt), pw[...], preferred_element_type=jnp.float32) + pb[...]
    cls1 = x3[:, 0, :] + cls                                          # residual, (TB, C)

    # ---- norm2 + FFN (exact GELU via erf) on the class tokens only ----
    cn = _layer_norm(cls1, n2w[...], n2b[...])
    h1 = jnp.dot(cn.astype(cdt), f1w[...], preferred_element_type=jnp.float32) + f1b[...]
    h1 = 0.5 * h1 * (1.0 + jax.lax.erf(h1 * _INV_SQRT2))
    cls2 = cls1 + jnp.dot(h1.astype(cdt), f2w[...],
                          preferred_element_type=jnp.float32) + f2b[...]       # (TB, C)

    # Output block covers only the first (sublane-aligned) 8 token rows: rows 1..7 are copied
    # through from x, row 0 gets the new class token.  Rows >= 8 are never written and keep
    # the aliased input's contents in HBM.
    o_ref[...] = x_ref[:, : o_ref.shape[1], :]
    o_ref[:, 0:1, :] = cls2[:, None, :].astype(o_ref.dtype)


def _pick_block_b(B, fits, max_tb=128):
    divs = [d for d in range(1, min(B, max_tb) + 1) if B % d == 0]
    ok = [d for d in divs if fits(d)] or [1]

    def pref(d):
        steps = B // d
        return (steps >= 4 and steps % 2 == 0,   # keep both v7x TensorCores pipelined
                steps >= 2,                      # at least some intra-core pipelining
                d % 8 == 0,                      # sublane-friendly M for class-token matmuls
                d)                               # then: as large as the budget allows

    return max(ok, key=pref)


def class_block(x, params, num_heads, *, block_b=None, compute_dtype=jnp.bfloat16):
    B, N, C = x.shape
    assert C % num_heads == 0
    head_dim = C // num_heads
    scale = head_dim ** (-0.5)
    hidden = params["fc1_w"].shape[1]
    cdt = compute_dtype

    # Pad the token axis to a sublane multiple so in-kernel merges are free re-tilings.
    n_pad = -(-N // 8) * 8
    xp = jnp.pad(x, ((0, 0), (0, n_pad - N), (0, 0))) if n_pad != N else x
    out_tok = 8                                  # sublane-aligned output window (holds token 0)

    # Constant operands: LN params, split k/v projections, scale folded into q, bf16 matmul
    # weights, bf16 0/1 head pool/expand matrices (exact in bf16).
    kv_w, kv_b = params["kv_w"], params["kv_b"]
    head_of_c = jnp.arange(C, dtype=jnp.int32) // head_dim
    pool = (head_of_c[:, None] == jnp.arange(num_heads, dtype=jnp.int32)[None, :]).astype(cdt)
    consts = [
        params["norm1_w"], params["norm1_b"], params["norm2_w"], params["norm2_b"],
        kv_w[:, :C].astype(cdt), kv_b[:, :C],
        kv_w[:, C:].astype(cdt), kv_b[:, C:],
        (params["q_w"] * scale).astype(cdt), params["q_b"] * scale,
        params["proj_w"].astype(cdt), params["proj_b"],
        params["fc1_w"].astype(cdt), params["fc1_b"],
        params["fc2_w"].astype(cdt), params["fc2_b"],
        pool, pool.T,
    ]

    # ---- generation-aware VMEM budget and batch tile ----
    try:
        vmem_cap = int(pltpu.get_tpu_info().vmem_capacity_bytes)
    except Exception:
        vmem_cap = 64 * 2 ** 20                  # conservative (v7x) if the query is unavailable
    budget = int(0.85 * vmem_cap)

    nbytes = lambda a: a.size * a.dtype.itemsize
    const_bytes = sum(nbytes(a) for a in consts)
    itemsize = x.dtype.itemsize

    def footprint(tb):                           # conservative: constants counted double-buffered
        blocks = 2 * (tb * n_pad * C + tb * out_tok * C) * itemsize
        acts = 8 * tb * n_pad * C * 4 + 4 * tb * hidden * 4
        return 2 * const_bytes + blocks + acts + (2 << 20)

    tb = block_b if block_b is not None else _pick_block_b(B, lambda d: footprint(d) <= budget)
    assert B % tb == 0
    vmem_limit = int(min(budget, max(32 * 2 ** 20, int(1.25 * footprint(tb)))))

    kernel = partial(_class_block_kernel, num_heads, head_dim, N)
    out_shape = jax.ShapeDtypeStruct(xp.shape, xp.dtype)
    x_spec = pl.BlockSpec((tb, n_pad, C), lambda b: (b, 0, 0))
    out_spec = pl.BlockSpec((tb, out_tok, C), lambda b: (b, 0, 0))
    cparams = pltpu.CompilerParams(dimension_semantics=("parallel",),
                                   vmem_limit_bytes=vmem_limit)

    def build(single_buffer_consts):
        if single_buffer_consts:
            cspec = lambda a: pl.BlockSpec(a.shape, lambda b: (0, 0),
                                           pipeline_mode=pl.Buffered(1))
        else:
            cspec = lambda a: pl.BlockSpec(a.shape, lambda b: (0, 0))
        return pl.pallas_call(
            kernel,
            out_shape=out_shape,
            grid_spec=pltpu.PrefetchScalarGridSpec(
                num_scalar_prefetch=0,
                grid=(B // tb,),
                in_specs=[x_spec] + [cspec(a) for a in consts],
                out_specs=out_spec,
            ),
            input_output_aliases={0: 0},          # write the class token in place
            compiler_params=cparams,
        )

    try:
        out = build(True)(xp, *consts)            # constants never change: single-buffer them
    except Exception:
        out = build(False)(xp, *consts)           # fallback if Buffered(1) is unsupported

    return out if n_pad == N else out[:, :N, :]


def init_params(key, dim, num_heads, mlp_ratio):
    hidden = int(dim * mlp_ratio)
    ks = jax.random.split(key, 5)
    tn = lambda k, shape: 0.02 * jax.random.truncated_normal(k, -2.0, 2.0, shape, jnp.float32)
    return {
        "norm1_w": jnp.ones((1, dim), jnp.float32),
        "norm1_b": jnp.zeros((1, dim), jnp.float32),
        "norm2_w": jnp.ones((1, dim), jnp.float32),
        "norm2_b": jnp.zeros((1, dim), jnp.float32),
        # Linear weights stored (in, out) = torch weight.T; biases zero (per _init_weights).
        "kv_w": tn(ks[0], (dim, 2 * dim)),
        "kv_b": jnp.zeros((1, 2 * dim), jnp.float32),
        "q_w": tn(ks[1], (dim, dim)),
        "q_b": jnp.zeros((1, dim), jnp.float32),
        "proj_w": tn(ks[2], (dim, dim)),
        "proj_b": jnp.zeros((1, dim), jnp.float32),
        "fc1_w": tn(ks[3], (dim, hidden)),
        "fc1_b": jnp.zeros((1, hidden), jnp.float32),
        "fc2_w": tn(ks[4], (hidden, dim)),
        "fc2_b": jnp.zeros((1, dim), jnp.float32),
    }


def reference(x, p, num_heads):
    """Pure-JAX fp32 mirror of ClassBlock.forward for validation."""
    B, N, C = x.shape
    head_dim = C // num_heads
    scale = head_dim ** (-0.5)

    def ln(t, w, b):
        mu = jnp.mean(t, axis=-1, keepdims=True)
        var = jnp.mean((t - mu) ** 2, axis=-1, keepdims=True)
        return (t - mu) * jax.lax.rsqrt(var + _LN_EPS) * w[0] + b[0]

    xn = ln(x, p["norm1_w"], p["norm1_b"])
    kv = (xn @ p["kv_w"] + p["kv_b"][0]).reshape(B, N, 2, num_heads, head_dim)
    kv = kv.transpose(2, 0, 3, 1, 4)                       # (2, B, H, N, D)
    k, v = kv[0], kv[1]
    q = (xn[:, :1] @ p["q_w"] + p["q_b"][0]).reshape(B, num_heads, 1, head_dim)
    attn = (q * scale) @ jnp.swapaxes(k, -2, -1)           # (B, H, 1, N)
    attn = jax.nn.softmax(attn, axis=-1)
    cls = (attn @ v).transpose(0, 2, 1, 3).reshape(B, 1, C)
    cls = cls @ p["proj_w"] + p["proj_b"][0]
    cls1 = x[:, :1] + cls
    cn = ln(cls1, p["norm2_w"], p["norm2_b"])
    h = cn @ p["fc1_w"] + p["fc1_b"][0]
    h = 0.5 * h * (1.0 + jax.lax.erf(h * _INV_SQRT2))
    mlp = h @ p["fc2_w"] + p["fc2_b"][0]
    cls2 = cls1 + mlp
    return jnp.concatenate([cls2, x[:, 1:]], axis=1)


if __name__ == "__main__":
    k1, k2, k3, k4 = jax.random.split(jax.random.PRNGKey(0), 4)

    # Case 1: token count already sublane-aligned (N % 8 == 0).
    B, N, C, H = 4, 8, 32, 4
    x = jax.random.normal(k1, (B, N, C), jnp.float32)
    params = init_params(k2, C, H, 4.0)
    ref = reference(x, params, H)                       # compute reference first
    out = jax.block_until_ready(class_block(x, params, H))
    assert out.shape == (B, N, C)
    err = float(jnp.max(jnp.abs(out - ref)))
    assert jnp.allclose(out, ref, atol=2e-2, rtol=2e-2), err

    # Case 2: ragged token count (exercises the pad + softmax-mask path) and TB > 1.
    B2, N2, C2, H2 = 2, 11, 32, 4
    x2 = jax.random.normal(k3, (B2, N2, C2), jnp.float32)
    params2 = init_params(k4, C2, H2, 2.0)
    ref2 = reference(x2, params2, H2)
    out2 = jax.block_until_ready(class_block(x2, params2, H2, block_b=2))
    assert out2.shape == (B2, N2, C2)
    err2 = float(jnp.max(jnp.abs(out2 - ref2)))
    assert jnp.allclose(out2, ref2, atol=2e-2, rtol=2e-2), err2

    print("KERNEL_OK")
</pallas_src>

<mosaic_0001>
module attributes {stable_mosaic.version = 11 : i64} {
  func.func @_class_block_kernel(%arg0: i32, %arg1: memref<1x8x32xf32, #tpu.memory_space<vmem>>, %arg2: memref<1x32xf32, #tpu.memory_space<vmem>>, %arg3: memref<1x32xf32, #tpu.memory_space<vmem>>, %arg4: memref<1x32xf32, #tpu.memory_space<vmem>>, %arg5: memref<1x32xf32, #tpu.memory_space<vmem>>, %arg6: memref<32x32xbf16, #tpu.memory_space<vmem>>, %arg7: memref<1x32xf32, #tpu.memory_space<vmem>>, %arg8: memref<32x32xbf16, #tpu.memory_space<vmem>>, %arg9: memref<1x32xf32, #tpu.memory_space<vmem>>, %arg10: memref<32x32xbf16, #tpu.memory_space<vmem>>, %arg11: memref<1x32xf32, #tpu.memory_space<vmem>>, %arg12: memref<32x32xbf16, #tpu.memory_space<vmem>>, %arg13: memref<1x32xf32, #tpu.memory_space<vmem>>, %arg14: memref<32x128xbf16, #tpu.memory_space<vmem>>, %arg15: memref<1x128xf32, #tpu.memory_space<vmem>>, %arg16: memref<128x32xbf16, #tpu.memory_space<vmem>>, %arg17: memref<1x32xf32, #tpu.memory_space<vmem>>, %arg18: memref<32x4xbf16, #tpu.memory_space<vmem>>, %arg19: memref<4x32xbf16, #tpu.memory_space<vmem>>, %arg20: memref<1x8x32xf32, #tpu.memory_space<vmem>>) attributes {dimension_semantics = [#tpu.dimension_semantics<parallel>], iteration_bounds = array<i64: 4>, scalar_prefetch = 0 : i64, scratch_operands = 0 : i64, tpu.core_type = #tpu.core_type<tc>, window_params = [{transform_indices = @transform_0, window_bounds = array<i64: 1, 8, 32>}, {pipeline_mode = #tpu.pipeline_mode<synchronous>, transform_indices = @transform_1, window_bounds = array<i64: 1, 32>}, {pipeline_mode = #tpu.pipeline_mode<synchronous>, transform_indices = @transform_2, window_bounds = array<i64: 1, 32>}, {pipeline_mode = #tpu.pipeline_mode<synchronous>, transform_indices = @transform_3, window_bounds = array<i64: 1, 32>}, {pipeline_mode = #tpu.pipeline_mode<synchronous>, transform_indices = @transform_4, window_bounds = array<i64: 1, 32>}, {pipeline_mode = #tpu.pipeline_mode<synchronous>, transform_indices = @transform_5, window_bounds = array<i64: 32, 32>}, {pipeline_mode = #tpu.pipeline_mode<synchronous>, transform_indices = @transform_6, window_bounds = array<i64: 1, 32>}, {pipeline_mode = #tpu.pipeline_mode<synchronous>, transform_indices = @transform_7, window_bounds = array<i64: 32, 32>}, {pipeline_mode = #tpu.pipeline_mode<synchronous>, transform_indices = @transform_8, window_bounds = array<i64: 1, 32>}, {pipeline_mode = #tpu.pipeline_mode<synchronous>, transform_indices = @transform_9, window_bounds = array<i64: 32, 32>}, {pipeline_mode = #tpu.pipeline_mode<synchronous>, transform_indices = @transform_10, window_bounds = array<i64: 1, 32>}, {pipeline_mode = #tpu.pipeline_mode<synchronous>, transform_indices = @transform_11, window_bounds = array<i64: 32, 32>}, {pipeline_mode = #tpu.pipeline_mode<synchronous>, transform_indices = @transform_12, window_bounds = array<i64: 1, 32>}, {pipeline_mode = #tpu.pipeline_mode<synchronous>, transform_indices = @transform_13, window_bounds = array<i64: 32, 128>}, {pipeline_mode = #tpu.pipeline_mode<synchronous>, transform_indices = @transform_14, window_bounds = array<i64: 1, 128>}, {pipeline_mode = #tpu.pipeline_mode<synchronous>, transform_indices = @transform_15, window_bounds = array<i64: 128, 32>}, {pipeline_mode = #tpu.pipeline_mode<synchronous>, transform_indices = @transform_16, window_bounds = array<i64: 1, 32>}, {pipeline_mode = #tpu.pipeline_mode<synchronous>, transform_indices = @transform_17, window_bounds = array<i64: 32, 4>}, {pipeline_mode = #tpu.pipeline_mode<synchronous>, transform_indices = @transform_18, window_bounds = array<i64: 4, 32>}, {transform_indices = @transform_19, window_bounds = array<i64: 1, 8, 32>}]} {
    %c0 = arith.constant 0 : index
    %c0_0 = arith.constant 0 : index
    %c0_1 = arith.constant 0 : index
    %0 = vector.load %arg1[%c0, %c0_0, %c0_1] : memref<1x8x32xf32, #tpu.memory_space<vmem>>, vector<1x8x32xf32>
    %c0_2 = arith.constant 0 : index
    %c0_3 = arith.constant 0 : index
    %1 = vector.load %arg2[%c0_2, %c0_3] : memref<1x32xf32, #tpu.memory_space<vmem>>, vector<1x32xf32>
    %c0_4 = arith.constant 0 : index
    %c0_5 = arith.constant 0 : index
    %2 = vector.load %arg3[%c0_4, %c0_5] : memref<1x32xf32, #tpu.memory_space<vmem>>, vector<1x32xf32>
    %cst = arith.constant dense<0.000000e+00> : vector<1x8xf32>
    %3 = vector.multi_reduction <add>, %0, %cst [2] : vector<1x8x32xf32> to vector<1x8xf32>
    %4 = vector.shape_cast %3 : vector<1x8xf32> to vector<1x8x1xf32>
    %cst_6 = arith.constant 3.200000e+01 : f32
    %5 = vector.broadcast %cst_6 : f32 to vector<1x8x1xf32>
    %6 = arith.divf %4, %5 : vector<1x8x1xf32>
    %7 = arith.mulf %0, %0 : vector<1x8x32xf32>
    %cst_7 = arith.constant dense<0.000000e+00> : vector<1x8xf32>
    %8 = vector.multi_reduction <add>, %7, %cst_7 [2] : vector<1x8x32xf32> to vector<1x8xf32>
    %9 = vector.shape_cast %8 : vector<1x8xf32> to vector<1x8x1xf32>
    %cst_8 = arith.constant 3.200000e+01 : f32
    %10 = vector.broadcast %cst_8 : f32 to vector<1x8x1xf32>
    %11 = arith.divf %9, %10 : vector<1x8x1xf32>
    %12 = arith.mulf %6, %6 : vector<1x8x1xf32>
    %13 = arith.subf %11, %12 : vector<1x8x1xf32>
    %14 = vector.broadcast %6 : vector<1x8x1xf32> to vector<1x8x32xf32>
    %15 = arith.subf %0, %14 : vector<1x8x32xf32>
    %cst_9 = arith.constant 9.99999974E-6 : f32
    %16 = vector.broadcast %cst_9 : f32 to vector<1x8x1xf32>
    %17 = arith.addf %13, %16 : vector<1x8x1xf32>
    %18 = math.rsqrt %17 : vector<1x8x1xf32>
    %19 = vector.shape_cast %1 : vector<1x32xf32> to vector<1x1x32xf32>
    %20 = vector.broadcast %18 : vector<1x8x1xf32> to vector<1x8x32xf32>
    %21 = vector.broadcast %19 : vector<1x1x32xf32> to vector<1x8x32xf32>
    %22 = arith.mulf %20, %21 : vector<1x8x32xf32>
    %23 = arith.mulf %15, %22 : vector<1x8x32xf32>
    %24 = vector.shape_cast %2 : vector<1x32xf32> to vector<1x1x32xf32>
    %25 = vector.broadcast %24 : vector<1x1x32xf32> to vector<1x8x32xf32>
    %26 = arith.addf %23, %25 : vector<1x8x32xf32>
    %27 = arith.truncf %26 : vector<1x8x32xf32> to vector<1x8x32xbf16>
    %28 = vector.shape_cast %27 : vector<1x8x32xbf16> to vector<8x32xbf16>
    %c0_10 = arith.constant 0 : index
    %c0_11 = arith.constant 0 : index
    %29 = vector.load %arg6[%c0_10, %c0_11] : memref<32x32xbf16, #tpu.memory_space<vmem>>, vector<32x32xbf16>
    %cst_12 = arith.constant dense<0.000000e+00> : vector<8x32xf32>
    %30 = tpu.matmul %28, %29, %cst_12 {dimension_numbers = #tpu.dot_dimension_numbers<[1], [0], [0], [1], [0, 0, 1, 1], [], []>} : vector<8x32xbf16>, vector<32x32xbf16>, vector<8x32xf32> -> vector<8x32xf32>
    %c0_13 = arith.constant 0 : index
    %c0_14 = arith.constant 0 : index
    %31 = vector.load %arg7[%c0_13, %c0_14] : memref<1x32xf32, #tpu.memory_space<vmem>>, vector<1x32xf32>
    %32 = vector.broadcast %31 : vector<1x32xf32> to vector<8x32xf32>
    %33 = arith.addf %30, %32 : vector<8x32xf32>
    %c0_15 = arith.constant 0 : index
    %c0_16 = arith.constant 0 : index
    %34 = vector.load %arg8[%c0_15, %c0_16] : memref<32x32xbf16, #tpu.memory_space<vmem>>, vector<32x32xbf16>
    %cst_17 = arith.constant dense<0.000000e+00> : vector<8x32xf32>
    %35 = tpu.matmul %28, %34, %cst_17 {dimension_numbers = #tpu.dot_dimension_numbers<[1], [0], [0], [1], [0, 0, 1, 1], [], []>} : vector<8x32xbf16>, vector<32x32xbf16>, vector<8x32xf32> -> vector<8x32xf32>
    %c0_18 = arith.constant 0 : index
    %c0_19 = arith.constant 0 : index
    %36 = vector.load %arg9[%c0_18, %c0_19] : memref<1x32xf32, #tpu.memory_space<vmem>>, vector<1x32xf32>
    %37 = vector.broadcast %36 : vector<1x32xf32> to vector<8x32xf32>
    %38 = arith.addf %35, %37 : vector<8x32xf32>
    %39 = vector.extract_strided_slice %27 {offsets = [0, 0, 0], sizes = [1, 1, 32], strides = [1, 1, 1]} : vector<1x8x32xbf16> to vector<1x1x32xbf16>
    %40 = vector.shape_cast %39 : vector<1x1x32xbf16> to vector<1x32xbf16>
    %c0_20 = arith.constant 0 : index
    %c0_21 = arith.constant 0 : index
    %41 = vector.load %arg10[%c0_20, %c0_21] : memref<32x32xbf16, #tpu.memory_space<vmem>>, vector<32x32xbf16>
    %cst_22 = arith.constant dense<0.000000e+00> : vector<1x32xf32>
    %42 = tpu.matmul %40, %41, %cst_22 {dimension_numbers = #tpu.dot_dimension_numbers<[1], [0], [0], [1], [0, 0, 1, 1], [], []>} : vector<1x32xbf16>, vector<32x32xbf16>, vector<1x32xf32> -> vector<1x32xf32>
    %c0_23 = arith.constant 0 : index
    %c0_24 = arith.constant 0 : index
    %43 = vector.load %arg11[%c0_23, %c0_24] : memref<1x32xf32, #tpu.memory_space<vmem>>, vector<1x32xf32>
    %44 = arith.addf %42, %43 : vector<1x32xf32>
    %45 = vector.shape_cast %33 : vector<8x32xf32> to vector<1x8x32xf32>
    %46 = vector.shape_cast %44 : vector<1x32xf32> to vector<1x1x32xf32>
    %47 = vector.broadcast %46 : vector<1x1x32xf32> to vector<1x8x32xf32>
    %48 = arith.mulf %45, %47 : vector<1x8x32xf32>
    %49 = vector.shape_cast %48 : vector<1x8x32xf32> to vector<8x32xf32>
    %50 = arith.truncf %49 : vector<8x32xf32> to vector<8x32xbf16>
    %c0_25 = arith.constant 0 : index
    %c0_26 = arith.constant 0 : index
    %51 = vector.load %arg18[%c0_25, %c0_26] : memref<32x4xbf16, #tpu.memory_space<vmem>>, vector<32x4xbf16>
    %cst_27 = arith.constant dense<0.000000e+00> : vector<8x4xf32>
    %52 = tpu.matmul %50, %51, %cst_27 {dimension_numbers = #tpu.dot_dimension_numbers<[1], [0], [0], [1], [0, 0, 1, 1], [], []>} : vector<8x32xbf16>, vector<32x4xbf16>, vector<8x4xf32> -> vector<8x4xf32>
    %53 = vector.shape_cast %52 : vector<8x4xf32> to vector<1x8x4xf32>
    %cst_28 = arith.constant dense<0xFF800000> : vector<1x4xf32>
    %54 = vector.multi_reduction <maximumf>, %53, %cst_28 [1] : vector<1x8x4xf32> to vector<1x4xf32>
    %55 = vector.shape_cast %54 : vector<1x4xf32> to vector<1x1x4xf32>
    %56 = vector.broadcast %55 : vector<1x1x4xf32> to vector<1x8x4xf32>
    %57 = arith.subf %53, %56 : vector<1x8x4xf32>
    %58 = math.exp %57 : vector<1x8x4xf32>
    %cst_29 = arith.constant dense<0.000000e+00> : vector<1x4xf32>
    %59 = vector.multi_reduction <add>, %58, %cst_29 [1] : vector<1x8x4xf32> to vector<1x4xf32>
    %60 = vector.shape_cast %59 : vector<1x4xf32> to vector<1x1x4xf32>
    %cst_30 = arith.constant 1.000000e+00 : f32
    %61 = vector.broadcast %cst_30 : f32 to vector<1x1x4xf32>
    %62 = arith.divf %61, %60 : vector<1x1x4xf32>
    %63 = vector.broadcast %62 : vector<1x1x4xf32> to vector<1x8x4xf32>
    %64 = arith.mulf %58, %63 : vector<1x8x4xf32>
    %65 = vector.shape_cast %64 : vector<1x8x4xf32> to vector<8x4xf32>
    %66 = arith.truncf %65 : vector<8x4xf32> to vector<8x4xbf16>
    %c0_31 = arith.constant 0 : index
    %c0_32 = arith.constant 0 : index
    %67 = vector.load %arg19[%c0_31, %c0_32] : memref<4x32xbf16, #tpu.memory_space<vmem>>, vector<4x32xbf16>
    %cst_33 = arith.constant dense<0.000000e+00> : vector<8x32xf32>
    %68 = tpu.matmul %66, %67, %cst_33 {dimension_numbers = #tpu.dot_dimension_numbers<[1], [0], [0], [1], [0, 0, 1, 1], [], []>} : vector<8x4xbf16>, vector<4x32xbf16>, vector<8x32xf32> -> vector<8x32xf32>
    %69 = vector.shape_cast %68 : vector<8x32xf32> to vector<1x8x32xf32>
    %70 = vector.shape_cast %38 : vector<8x32xf32> to vector<1x8x32xf32>
    %71 = arith.mulf %69, %70 : vector<1x8x32xf32>
    %cst_34 = arith.constant dense<0.000000e+00> : vector<1x32xf32>
    %72 = vector.multi_reduction <add>, %71, %cst_34 [1] : vector<1x8x32xf32> to vector<1x32xf32>
    %73 = arith.truncf %72 : vector<1x32xf32> to vector<1x32xbf16>
    %c0_35 = arith.constant 0 : index
    %c0_36 = arith.constant 0 : index
    %74 = vector.load %arg12[%c0_35, %c0_36] : memref<32x32xbf16, #tpu.memory_space<vmem>>, vector<32x32xbf16>
    %cst_37 = arith.constant dense<0.000000e+00> : vector<1x32xf32>
    %75 = tpu.matmul %73, %74, %cst_37 {dimension_numbers = #tpu.dot_dimension_numbers<[1], [0], [0], [1], [0, 0, 1, 1], [], []>} : vector<1x32xbf16>, vector<32x32xbf16>, vector<1x32xf32> -> vector<1x32xf32>
    %c0_38 = arith.constant 0 : index
    %c0_39 = arith.constant 0 : index
    %76 = vector.load %arg13[%c0_38, %c0_39] : memref<1x32xf32, #tpu.memory_space<vmem>>, vector<1x32xf32>
    %77 = arith.addf %75, %76 : vector<1x32xf32>
    %78 = vector.extract_strided_slice %0 {offsets = [0, 0, 0], sizes = [1, 1, 32], strides = [1, 1, 1]} : vector<1x8x32xf32> to vector<1x1x32xf32>
    %79 = vector.shape_cast %78 : vector<1x1x32xf32> to vector<1x32xf32>
    %80 = arith.addf %79, %77 : vector<1x32xf32>
    %c0_40 = arith.constant 0 : index
    %c0_41 = arith.constant 0 : index
    %81 = vector.load %arg4[%c0_40, %c0_41] : memref<1x32xf32, #tpu.memory_space<vmem>>, vector<1x32xf32>
    %c0_42 = arith.constant 0 : index
    %c0_43 = arith.constant 0 : index
    %82 = vector.load %arg5[%c0_42, %c0_43] : memref<1x32xf32, #tpu.memory_space<vmem>>, vector<1x32xf32>
    %cst_44 = arith.constant dense<0.000000e+00> : vector<1xf32>
    %83 = vector.multi_reduction <add>, %80, %cst_44 [1] : vector<1x32xf32> to vector<1xf32>
    %84 = vector.shape_cast %83 : vector<1xf32> to vector<1x1xf32>
    %cst_45 = arith.constant 3.200000e+01 : f32
    %85 = vector.broadcast %cst_45 : f32 to vector<1x1xf32>
    %86 = arith.divf %84, %85 : vector<1x1xf32>
    %87 = arith.mulf %80, %80 : vector<1x32xf32>
    %cst_46 = arith.constant dense<0.000000e+00> : vector<1xf32>
    %88 = vector.multi_reduction <add>, %87, %cst_46 [1] : vector<1x32xf32> to vector<1xf32>
    %89 = vector.shape_cast %88 : vector<1xf32> to vector<1x1xf32>
    %cst_47 = arith.constant 3.200000e+01 : f32
    %90 = vector.broadcast %cst_47 : f32 to vector<1x1xf32>
    %91 = arith.divf %89, %90 : vector<1x1xf32>
    %92 = arith.mulf %86, %86 : vector<1x1xf32>
    %93 = arith.subf %91, %92 : vector<1x1xf32>
    %94 = vector.broadcast %86 : vector<1x1xf32> to vector<1x32xf32>
    %95 = arith.subf %80, %94 : vector<1x32xf32>
    %cst_48 = arith.constant 9.99999974E-6 : f32
    %96 = vector.broadcast %cst_48 : f32 to vector<1x1xf32>
    %97 = arith.addf %93, %96 : vector<1x1xf32>
    %98 = math.rsqrt %97 : vector<1x1xf32>
    %99 = vector.broadcast %98 : vector<1x1xf32> to vector<1x32xf32>
    %100 = arith.mulf %99, %81 : vector<1x32xf32>
    %101 = arith.mulf %95, %100 : vector<1x32xf32>
    %102 = arith.addf %101, %82 : vector<1x32xf32>
    %103 = arith.truncf %102 : vector<1x32xf32> to vector<1x32xbf16>
    %c0_49 = arith.constant 0 : index
    %c0_50 = arith.constant 0 : index
    %104 = vector.load %arg14[%c0_49, %c0_50] : memref<32x128xbf16, #tpu.memory_space<vmem>>, vector<32x128xbf16>
    %cst_51 = arith.constant dense<0.000000e+00> : vector<1x128xf32>
    %105 = tpu.matmul %103, %104, %cst_51 {dimension_numbers = #tpu.dot_dimension_numbers<[1], [0], [0], [1], [0, 0, 1, 1], [], []>} : vector<1x32xbf16>, vector<32x128xbf16>, vector<1x128xf32> -> vector<1x128xf32>
    %c0_52 = arith.constant 0 : index
    %c0_53 = arith.constant 0 : index
    %106 = vector.load %arg15[%c0_52, %c0_53] : memref<1x128xf32, #tpu.memory_space<vmem>>, vector<1x128xf32>
    %107 = arith.addf %105, %106 : vector<1x128xf32>
    %cst_54 = arith.constant 5.000000e-01 : f32
    %108 = vector.broadcast %cst_54 : f32 to vector<1x128xf32>
    %109 = arith.mulf %108, %107 : vector<1x128xf32>
    %cst_55 = arith.constant 0.707106769 : f32
    %110 = vector.broadcast %cst_55 : f32 to vector<1x128xf32>
    %111 = arith.mulf %107, %110 : vector<1x128xf32>
    %112 = math.erf %111 : vector<1x128xf32>
    %cst_56 = arith.constant 1.000000e+00 : f32
    %113 = vector.broadcast %cst_56 : f32 to vector<1x128xf32>
    %114 = arith.addf %113, %112 : vector<1x128xf32>
    %115 = arith.mulf %109, %114 : vector<1x128xf32>
    %116 = arith.truncf %115 : vector<1x128xf32> to vector<1x128xbf16>
    %c0_57 = arith.constant 0 : index
    %c0_58 = arith.constant 0 : index
    %117 = vector.load %arg16[%c0_57, %c0_58] : memref<128x32xbf16, #tpu.memory_space<vmem>>, vector<128x32xbf16>
    %cst_59 = arith.constant dense<0.000000e+00> : vector<1x32xf32>
    %118 = tpu.matmul %116, %117, %cst_59 {dimension_numbers = #tpu.dot_dimension_numbers<[1], [0], [0], [1], [0, 0, 1, 1], [], []>} : vector<1x128xbf16>, vector<128x32xbf16>, vector<1x32xf32> -> vector<1x32xf32>
    %119 = arith.addf %80, %118 : vector<1x32xf32>
    %c0_60 = arith.constant 0 : index
    %c0_61 = arith.constant 0 : index
    %120 = vector.load %arg17[%c0_60, %c0_61] : memref<1x32xf32, #tpu.memory_space<vmem>>, vector<1x32xf32>
    %121 = arith.addf %119, %120 : vector<1x32xf32>
    %c0_62 = arith.constant 0 : index
    %c0_63 = arith.constant 0 : index
    %c0_64 = arith.constant 0 : index
    %122 = vector.load %arg1[%c0_62, %c0_63, %c0_64] : memref<1x8x32xf32, #tpu.memory_space<vmem>>, vector<1x8x32xf32>
    %c0_65 = arith.constant 0 : index
    %c0_66 = arith.constant 0 : index
    %c0_67 = arith.constant 0 : index
    %123 = vector.load %arg20[%c0_65, %c0_66, %c0_67] : memref<1x8x32xf32, #tpu.memory_space<vmem>>, vector<1x8x32xf32>
    tpu.vector_store %arg20[%c0_65, %c0_66, %c0_67], %122 {strides = array<i32>} : memref<1x8x32xf32, #tpu.memory_space<vmem>>, vector<1x8x32xf32>,
    %124 = vector.shape_cast %121 : vector<1x32xf32> to vector<1x1x32xf32>
    %c0_68 = arith.constant 0 : index
    %c0_69 = arith.constant 0 : index
    %c0_70 = arith.constant 0 : index
    %125 = vector.load %arg20[%c0_68, %c0_69, %c0_70] : memref<1x8x32xf32, #tpu.memory_space<vmem>>, vector<1x1x32xf32>
    tpu.vector_store %arg20[%c0_68, %c0_69, %c0_70], %124 {strides = array<i32>} : memref<1x8x32xf32, #tpu.memory_space<vmem>>, vector<1x1x32xf32>,
    return
  }
  func.func @transform_0(%arg0: i32) -> (i32, i32, i32) {
    %c0_i32 = arith.constant 0 : i32
    %c0_i32_0 = arith.constant 0 : i32
    %c0_i32_1 = arith.constant 0 : i32
    return %arg0, %c0_i32, %c0_i32_0 : i32, i32, i32
  }
  func.func @transform_1(%arg0: i32) -> (i32, i32) {
    %c0_i32 = arith.constant 0 : i32
    %c0_i32_0 = arith.constant 0 : i32
    %c0_i32_1 = arith.constant 0 : i32
    return %c0_i32, %c0_i32_0 : i32, i32
  }
  func.func @transform_2(%arg0: i32) -> (i32, i32) {
    %c0_i32 = arith.constant 0 : i32
    %c0_i32_0 = arith.constant 0 : i32
    %c0_i32_1 = arith.constant 0 : i32
    return %c0_i32, %c0_i32_0 : i32, i32
  }
  func.func @transform_3(%arg0: i32) -> (i32, i32) {
    %c0_i32 = arith.constant 0 : i32
    %c0_i32_0 = arith.constant 0 : i32
    %c0_i32_1 = arith.constant 0 : i32
    return %c0_i32, %c0_i32_0 : i32, i32
  }
  func.func @transform_4(%arg0: i32) -> (i32, i32) {
    %c0_i32 = arith.constant 0 : i32
    %c0_i32_0 = arith.constant 0 : i32
    %c0_i32_1 = arith.constant 0 : i32
    return %c0_i32, %c0_i32_0 : i32, i32
  }
  func.func @transform_5(%arg0: i32) -> (i32, i32) {
    %c0_i32 = arith.constant 0 : i32
    %c0_i32_0 = arith.constant 0 : i32
    %c0_i32_1 = arith.constant 0 : i32
    return %c0_i32, %c0_i32_0 : i32, i32
  }
  func.func @transform_6(%arg0: i32) -> (i32, i32) {
    %c0_i32 = arith.constant 0 : i32
    %c0_i32_0 = arith.constant 0 : i32
    %c0_i32_1 = arith.constant 0 : i32
    return %c0_i32, %c0_i32_0 : i32, i32
  }
  func.func @transform_7(%arg0: i32) -> (i32, i32) {
    %c0_i32 = arith.constant 0 : i32
    %c0_i32_0 = arith.constant 0 : i32
    %c0_i32_1 = arith.constant 0 : i32
    return %c0_i32, %c0_i32_0 : i32, i32
  }
  func.func @transform_8(%arg0: i32) -> (i32, i32) {
    %c0_i32 = arith.constant 0 : i32
    %c0_i32_0 = arith.constant 0 : i32
    %c0_i32_1 = arith.constant 0 : i32
    return %c0_i32, %c0_i32_0 : i32, i32
  }
  func.func @transform_9(%arg0: i32) -> (i32, i32) {
    %c0_i32 = arith.constant 0 : i32
    %c0_i32_0 = arith.constant 0 : i32
    %c0_i32_1 = arith.constant 0 : i32
    return %c0_i32, %c0_i32_0 : i32, i32
  }
  func.func @transform_10(%arg0: i32) -> (i32, i32) {
    %c0_i32 = arith.constant 0 : i32
    %c0_i32_0 = arith.constant 0 : i32
    %c0_i32_1 = arith.constant 0 : i32
    return %c0_i32, %c0_i32_0 : i32, i32
  }
  func.func @transform_11(%arg0: i32) -> (i32, i32) {
    %c0_i32 = arith.constant 0 : i32
    %c0_i32_0 = arith.constant 0 : i32
    %c0_i32_1 = arith.constant 0 : i32
    return %c0_i32, %c0_i32_0 : i32, i32
  }
  func.func @transform_12(%arg0: i32) -> (i32, i32) {
    %c0_i32 = arith.constant 0 : i32
    %c0_i32_0 = arith.constant 0 : i32
    %c0_i32_1 = arith.constant 0 : i32
    return %c0_i32, %c0_i32_0 : i32, i32
  }
  func.func @transform_13(%arg0: i32) -> (i32, i32) {
    %c0_i32 = arith.constant 0 : i32
    %c0_i32_0 = arith.constant 0 : i32
    %c0_i32_1 = arith.constant 0 : i32
    return %c0_i32, %c0_i32_0 : i32, i32
  }
  func.func @transform_14(%arg0: i32) -> (i32, i32) {
    %c0_i32 = arith.constant 0 : i32
    %c0_i32_0 = arith.constant 0 : i32
    %c0_i32_1 = arith.constant 0 : i32
    return %c0_i32, %c0_i32_0 : i32, i32
  }
  func.func @transform_15(%arg0: i32) -> (i32, i32) {
    %c0_i32 = arith.constant 0 : i32
    %c0_i32_0 = arith.constant 0 : i32
    %c0_i32_1 = arith.constant 0 : i32
    return %c0_i32, %c0_i32_0 : i32, i32
  }
  func.func @transform_16(%arg0: i32) -> (i32, i32) {
    %c0_i32 = arith.constant 0 : i32
    %c0_i32_0 = arith.constant 0 : i32
    %c0_i32_1 = arith.constant 0 : i32
    return %c0_i32, %c0_i32_0 : i32, i32
  }
  func.func @transform_17(%arg0: i32) -> (i32, i32) {
    %c0_i32 = arith.constant 0 : i32
    %c0_i32_0 = arith.constant 0 : i32
    %c0_i32_1 = arith.constant 0 : i32
    return %c0_i32, %c0_i32_0 : i32, i32
  }
  func.func @transform_18(%arg0: i32) -> (i32, i32) {
    %c0_i32 = arith.constant 0 : i32
    %c0_i32_0 = arith.constant 0 : i32
    %c0_i32_1 = arith.constant 0 : i32
    return %c0_i32, %c0_i32_0 : i32, i32
  }
  func.func @transform_19(%arg0: i32) -> (i32, i32, i32) {
    %c0_i32 = arith.constant 0 : i32
    %c0_i32_0 = arith.constant 0 : i32
    %c0_i32_1 = arith.constant 0 : i32
    return %arg0, %c0_i32, %c0_i32_0 : i32, i32, i32
  }
}

module attributes {stable_mosaic.version = 11 : i64} {
  func.func @_class_block_kernel(%arg0: i32, %arg1: memref<1x8x32xf32, #tpu.memory_space<vmem>>, %arg2: memref<1x32xf32, #tpu.memory_space<vmem>>, %arg3: memref<1x32xf32, #tpu.memory_space<vmem>>, %arg4: memref<1x32xf32, #tpu.memory_space<vmem>>, %arg5: memref<1x32xf32, #tpu.memory_space<vmem>>, %arg6: memref<32x32xbf16, #tpu.memory_space<vmem>>, %arg7: memref<1x32xf32, #tpu.memory_space<vmem>>, %arg8: memref<32x32xbf16, #tpu.memory_space<vmem>>, %arg9: memref<1x32xf32, #tpu.memory_space<vmem>>, %arg10: memref<32x32xbf16, #tpu.memory_space<vmem>>, %arg11: memref<1x32xf32, #tpu.memory_space<vmem>>, %arg12: memref<32x32xbf16, #tpu.memory_space<vmem>>, %arg13: memref<1x32xf32, #tpu.memory_space<vmem>>, %arg14: memref<32x128xbf16, #tpu.memory_space<vmem>>, %arg15: memref<1x128xf32, #tpu.memory_space<vmem>>, %arg16: memref<128x32xbf16, #tpu.memory_space<vmem>>, %arg17: memref<1x32xf32, #tpu.memory_space<vmem>>, %arg18: memref<32x4xbf16, #tpu.memory_space<vmem>>, %arg19: memref<4x32xbf16, #tpu.memory_space<vmem>>, %arg20: memref<1x8x32xf32, #tpu.memory_space<vmem>>) attributes {dimension_semantics = [#tpu.dimension_semantics<parallel>], iteration_bounds = array<i64: 4>, scalar_prefetch = 0 : i64, scratch_operands = 0 : i64, tpu.core_type = #tpu.core_type<tc>, window_params = [{transform_indices = @transform_0, window_bounds = array<i64: 1, 8, 32>}, {pipeline_mode = #tpu.pipeline_mode<synchronous>, transform_indices = @transform_1, window_bounds = array<i64: 1, 32>}, {pipeline_mode = #tpu.pipeline_mode<synchronous>, transform_indices = @transform_2, window_bounds = array<i64: 1, 32>}, {pipeline_mode = #tpu.pipeline_mode<synchronous>, transform_indices = @transform_3, window_bounds = array<i64: 1, 32>}, {pipeline_mode = #tpu.pipeline_mode<synchronous>, transform_indices = @transform_4, window_bounds = array<i64: 1, 32>}, {pipeline_mode = #tpu.pipeline_mode<synchronous>, transform_indices = @transform_5, window_bounds = array<i64: 32, 32>}, {pipeline_mode = #tpu.pipeline_mode<synchronous>, transform_indices = @transform_6, window_bounds = array<i64: 1, 32>}, {pipeline_mode = #tpu.pipeline_mode<synchronous>, transform_indices = @transform_7, window_bounds = array<i64: 32, 32>}, {pipeline_mode = #tpu.pipeline_mode<synchronous>, transform_indices = @transform_8, window_bounds = array<i64: 1, 32>}, {pipeline_mode = #tpu.pipeline_mode<synchronous>, transform_indices = @transform_9, window_bounds = array<i64: 32, 32>}, {pipeline_mode = #tpu.pipeline_mode<synchronous>, transform_indices = @transform_10, window_bounds = array<i64: 1, 32>}, {pipeline_mode = #tpu.pipeline_mode<synchronous>, transform_indices = @transform_11, window_bounds = array<i64: 32, 32>}, {pipeline_mode = #tpu.pipeline_mode<synchronous>, transform_indices = @transform_12, window_bounds = array<i64: 1, 32>}, {pipeline_mode = #tpu.pipeline_mode<synchronous>, transform_indices = @transform_13, window_bounds = array<i64: 32, 128>}, {pipeline_mode = #tpu.pipeline_mode<synchronous>, transform_indices = @transform_14, window_bounds = array<i64: 1, 128>}, {pipeline_mode = #tpu.pipeline_mode<synchronous>, transform_indices = @transform_15, window_bounds = array<i64: 128, 32>}, {pipeline_mode = #tpu.pipeline_mode<synchronous>, transform_indices = @transform_16, window_bounds = array<i64: 1, 32>}, {pipeline_mode = #tpu.pipeline_mode<synchronous>, transform_indices = @transform_17, window_bounds = array<i64: 32, 4>}, {pipeline_mode = #tpu.pipeline_mode<synchronous>, transform_indices = @transform_18, window_bounds = array<i64: 4, 32>}, {transform_indices = @transform_19, window_bounds = array<i64: 1, 8, 32>}]} {
    %c0 = arith.constant 0 : index
    %c0_0 = arith.constant 0 : index
    %c0_1 = arith.constant 0 : index
    %0 = vector.load %arg1[%c0, %c0_0, %c0_1] : memref<1x8x32xf32, #tpu.memory_space<vmem>>, vector<1x8x32xf32>
    %c0_2 = arith.constant 0 : index
    %c0_3 = arith.constant 0 : index
    %1 = vector.load %arg2[%c0_2, %c0_3] : memref<1x32xf32, #tpu.memory_space<vmem>>, vector<1x32xf32>
    %c0_4 = arith.constant 0 : index
    %c0_5 = arith.constant 0 : index
    %2 = vector.load %arg3[%c0_4, %c0_5] : memref<1x32xf32, #tpu.memory_space<vmem>>, vector<1x32xf32>
    %cst = arith.constant dense<0.000000e+00> : vector<1x8xf32>
    %3 = vector.multi_reduction <add>, %0, %cst [2] : vector<1x8x32xf32> to vector<1x8xf32>
    %4 = vector.shape_cast %3 : vector<1x8xf32> to vector<1x8x1xf32>
    %cst_6 = arith.constant 3.200000e+01 : f32
    %5 = vector.broadcast %cst_6 : f32 to vector<1x8x1xf32>
    %6 = arith.divf %4, %5 : vector<1x8x1xf32>
    %7 = arith.mulf %0, %0 : vector<1x8x32xf32>
    %cst_7 = arith.constant dense<0.000000e+00> : vector<1x8xf32>
    %8 = vector.multi_reduction <add>, %7, %cst_7 [2] : vector<1x8x32xf32> to vector<1x8xf32>
    %9 = vector.shape_cast %8 : vector<1x8xf32> to vector<1x8x1xf32>
    %cst_8 = arith.constant 3.200000e+01 : f32
    %10 = vector.broadcast %cst_8 : f32 to vector<1x8x1xf32>
    %11 = arith.divf %9, %10 : vector<1x8x1xf32>
    %12 = arith.mulf %6, %6 : vector<1x8x1xf32>
    %13 = arith.subf %11, %12 : vector<1x8x1xf32>
    %14 = vector.broadcast %6 : vector<1x8x1xf32> to vector<1x8x32xf32>
    %15 = arith.subf %0, %14 : vector<1x8x32xf32>
    %cst_9 = arith.constant 9.99999974E-6 : f32
    %16 = vector.broadcast %cst_9 : f32 to vector<1x8x1xf32>
    %17 = arith.addf %13, %16 : vector<1x8x1xf32>
    %18 = math.rsqrt %17 : vector<1x8x1xf32>
    %19 = vector.shape_cast %1 : vector<1x32xf32> to vector<1x1x32xf32>
    %20 = vector.broadcast %18 : vector<1x8x1xf32> to vector<1x8x32xf32>
    %21 = vector.broadcast %19 : vector<1x1x32xf32> to vector<1x8x32xf32>
    %22 = arith.mulf %20, %21 : vector<1x8x32xf32>
    %23 = arith.mulf %15, %22 : vector<1x8x32xf32>
    %24 = vector.shape_cast %2 : vector<1x32xf32> to vector<1x1x32xf32>
    %25 = vector.broadcast %24 : vector<1x1x32xf32> to vector<1x8x32xf32>
    %26 = arith.addf %23, %25 : vector<1x8x32xf32>
    %27 = arith.truncf %26 : vector<1x8x32xf32> to vector<1x8x32xbf16>
    %28 = vector.shape_cast %27 : vector<1x8x32xbf16> to vector<8x32xbf16>
    %c0_10 = arith.constant 0 : index
    %c0_11 = arith.constant 0 : index
    %29 = vector.load %arg6[%c0_10, %c0_11] : memref<32x32xbf16, #tpu.memory_space<vmem>>, vector<32x32xbf16>
    %cst_12 = arith.constant dense<0.000000e+00> : vector<8x32xf32>
    %30 = tpu.matmul %28, %29, %cst_12 {dimension_numbers = #tpu.dot_dimension_numbers<[1], [0], [0], [1], [0, 0, 1, 1], [], []>} : vector<8x32xbf16>, vector<32x32xbf16>, vector<8x32xf32> -> vector<8x32xf32>
    %c0_13 = arith.constant 0 : index
    %c0_14 = arith.constant 0 : index
    %31 = vector.load %arg7[%c0_13, %c0_14] : memref<1x32xf32, #tpu.memory_space<vmem>>, vector<1x32xf32>
    %32 = vector.broadcast %31 : vector<1x32xf32> to vector<8x32xf32>
    %33 = arith.addf %30, %32 : vector<8x32xf32>
    %c0_15 = arith.constant 0 : index
    %c0_16 = arith.constant 0 : index
    %34 = vector.load %arg8[%c0_15, %c0_16] : memref<32x32xbf16, #tpu.memory_space<vmem>>, vector<32x32xbf16>
    %cst_17 = arith.constant dense<0.000000e+00> : vector<8x32xf32>
    %35 = tpu.matmul %28, %34, %cst_17 {dimension_numbers = #tpu.dot_dimension_numbers<[1], [0], [0], [1], [0, 0, 1, 1], [], []>} : vector<8x32xbf16>, vector<32x32xbf16>, vector<8x32xf32> -> vector<8x32xf32>
    %c0_18 = arith.constant 0 : index
    %c0_19 = arith.constant 0 : index
    %36 = vector.load %arg9[%c0_18, %c0_19] : memref<1x32xf32, #tpu.memory_space<vmem>>, vector<1x32xf32>
    %37 = vector.broadcast %36 : vector<1x32xf32> to vector<8x32xf32>
    %38 = arith.addf %35, %37 : vector<8x32xf32>
    %39 = vector.extract_strided_slice %27 {offsets = [0, 0, 0], sizes = [1, 1, 32], strides = [1, 1, 1]} : vector<1x8x32xbf16> to vector<1x1x32xbf16>
    %40 = vector.shape_cast %39 : vector<1x1x32xbf16> to vector<1x32xbf16>
    %c0_20 = arith.constant 0 : index
    %c0_21 = arith.constant 0 : index
    %41 = vector.load %arg10[%c0_20, %c0_21] : memref<32x32xbf16, #tpu.memory_space<vmem>>, vector<32x32xbf16>
    %cst_22 = arith.constant dense<0.000000e+00> : vector<1x32xf32>
    %42 = tpu.matmul %40, %41, %cst_22 {dimension_numbers = #tpu.dot_dimension_numbers<[1], [0], [0], [1], [0, 0, 1, 1], [], []>} : vector<1x32xbf16>, vector<32x32xbf16>, vector<1x32xf32> -> vector<1x32xf32>
    %c0_23 = arith.constant 0 : index
    %c0_24 = arith.constant 0 : index
    %43 = vector.load %arg11[%c0_23, %c0_24] : memref<1x32xf32, #tpu.memory_space<vmem>>, vector<1x32xf32>
    %44 = arith.addf %42, %43 : vector<1x32xf32>
    %45 = vector.shape_cast %33 : vector<8x32xf32> to vector<1x8x32xf32>
    %46 = vector.shape_cast %44 : vector<1x32xf32> to vector<1x1x32xf32>
    %47 = vector.broadcast %46 : vector<1x1x32xf32> to vector<1x8x32xf32>
    %48 = arith.mulf %45, %47 : vector<1x8x32xf32>
    %49 = vector.shape_cast %48 : vector<1x8x32xf32> to vector<8x32xf32>
    %50 = arith.truncf %49 : vector<8x32xf32> to vector<8x32xbf16>
    %c0_25 = arith.constant 0 : index
    %c0_26 = arith.constant 0 : index
    %51 = vector.load %arg18[%c0_25, %c0_26] : memref<32x4xbf16, #tpu.memory_space<vmem>>, vector<32x4xbf16>
    %cst_27 = arith.constant dense<0.000000e+00> : vector<8x4xf32>
    %52 = tpu.matmul %50, %51, %cst_27 {dimension_numbers = #tpu.dot_dimension_numbers<[1], [0], [0], [1], [0, 0, 1, 1], [], []>} : vector<8x32xbf16>, vector<32x4xbf16>, vector<8x4xf32> -> vector<8x4xf32>
    %53 = vector.shape_cast %52 : vector<8x4xf32> to vector<1x8x4xf32>
    %cst_28 = arith.constant dense<0xFF800000> : vector<1x4xf32>
    %54 = vector.multi_reduction <maximumf>, %53, %cst_28 [1] : vector<1x8x4xf32> to vector<1x4xf32>
    %55 = vector.shape_cast %54 : vector<1x4xf32> to vector<1x1x4xf32>
    %56 = vector.broadcast %55 : vector<1x1x4xf32> to vector<1x8x4xf32>
    %57 = arith.subf %53, %56 : vector<1x8x4xf32>
    %58 = math.exp %57 : vector<1x8x4xf32>
    %cst_29 = arith.constant dense<0.000000e+00> : vector<1x4xf32>
    %59 = vector.multi_reduction <add>, %58, %cst_29 [1] : vector<1x8x4xf32> to vector<1x4xf32>
    %60 = vector.shape_cast %59 : vector<1x4xf32> to vector<1x1x4xf32>
    %cst_30 = arith.constant 1.000000e+00 : f32
    %61 = vector.broadcast %cst_30 : f32 to vector<1x1x4xf32>
    %62 = arith.divf %61, %60 : vector<1x1x4xf32>
    %63 = vector.broadcast %62 : vector<1x1x4xf32> to vector<1x8x4xf32>
    %64 = arith.mulf %58, %63 : vector<1x8x4xf32>
    %65 = vector.shape_cast %64 : vector<1x8x4xf32> to vector<8x4xf32>
    %66 = arith.truncf %65 : vector<8x4xf32> to vector<8x4xbf16>
    %c0_31 = arith.constant 0 : index
    %c0_32 = arith.constant 0 : index
    %67 = vector.load %arg19[%c0_31, %c0_32] : memref<4x32xbf16, #tpu.memory_space<vmem>>, vector<4x32xbf16>
    %cst_33 = arith.constant dense<0.000000e+00> : vector<8x32xf32>
    %68 = tpu.matmul %66, %67, %cst_33 {dimension_numbers = #tpu.dot_dimension_numbers<[1], [0], [0], [1], [0, 0, 1, 1], [], []>} : vector<8x4xbf16>, vector<4x32xbf16>, vector<8x32xf32> -> vector<8x32xf32>
    %69 = vector.shape_cast %68 : vector<8x32xf32> to vector<1x8x32xf32>
    %70 = vector.shape_cast %38 : vector<8x32xf32> to vector<1x8x32xf32>
    %71 = arith.mulf %69, %70 : vector<1x8x32xf32>
    %cst_34 = arith.constant dense<0.000000e+00> : vector<1x32xf32>
    %72 = vector.multi_reduction <add>, %71, %cst_34 [1] : vector<1x8x32xf32> to vector<1x32xf32>
    %73 = arith.truncf %72 : vector<1x32xf32> to vector<1x32xbf16>
    %c0_35 = arith.constant 0 : index
    %c0_36 = arith.constant 0 : index
    %74 = vector.load %arg12[%c0_35, %c0_36] : memref<32x32xbf16, #tpu.memory_space<vmem>>, vector<32x32xbf16>
    %cst_37 = arith.constant dense<0.000000e+00> : vector<1x32xf32>
    %75 = tpu.matmul %73, %74, %cst_37 {dimension_numbers = #tpu.dot_dimension_numbers<[1], [0], [0], [1], [0, 0, 1, 1], [], []>} : vector<1x32xbf16>, vector<32x32xbf16>, vector<1x32xf32> -> vector<1x32xf32>
    %c0_38 = arith.constant 0 : index
    %c0_39 = arith.constant 0 : index
    %76 = vector.load %arg13[%c0_38, %c0_39] : memref<1x32xf32, #tpu.memory_space<vmem>>, vector<1x32xf32>
    %77 = arith.addf %75, %76 : vector<1x32xf32>
    %78 = vector.extract_strided_slice %0 {offsets = [0, 0, 0], sizes = [1, 1, 32], strides = [1, 1, 1]} : vector<1x8x32xf32> to vector<1x1x32xf32>
    %79 = vector.shape_cast %78 : vector<1x1x32xf32> to vector<1x32xf32>
    %80 = arith.addf %79, %77 : vector<1x32xf32>
    %c0_40 = arith.constant 0 : index
    %c0_41 = arith.constant 0 : index
    %81 = vector.load %arg4[%c0_40, %c0_41] : memref<1x32xf32, #tpu.memory_space<vmem>>, vector<1x32xf32>
    %c0_42 = arith.constant 0 : index
    %c0_43 = arith.constant 0 : index
    %82 = vector.load %arg5[%c0_42, %c0_43] : memref<1x32xf32, #tpu.memory_space<vmem>>, vector<1x32xf32>
    %cst_44 = arith.constant dense<0.000000e+00> : vector<1xf32>
    %83 = vector.multi_reduction <add>, %80, %cst_44 [1] : vector<1x32xf32> to vector<1xf32>
    %84 = vector.shape_cast %83 : vector<1xf32> to vector<1x1xf32>
    %cst_45 = arith.constant 3.200000e+01 : f32
    %85 = vector.broadcast %cst_45 : f32 to vector<1x1xf32>
    %86 = arith.divf %84, %85 : vector<1x1xf32>
    %87 = arith.mulf %80, %80 : vector<1x32xf32>
    %cst_46 = arith.constant dense<0.000000e+00> : vector<1xf32>
    %88 = vector.multi_reduction <add>, %87, %cst_46 [1] : vector<1x32xf32> to vector<1xf32>
    %89 = vector.shape_cast %88 : vector<1xf32> to vector<1x1xf32>
    %cst_47 = arith.constant 3.200000e+01 : f32
    %90 = vector.broadcast %cst_47 : f32 to vector<1x1xf32>
    %91 = arith.divf %89, %90 : vector<1x1xf32>
    %92 = arith.mulf %86, %86 : vector<1x1xf32>
    %93 = arith.subf %91, %92 : vector<1x1xf32>
    %94 = vector.broadcast %86 : vector<1x1xf32> to vector<1x32xf32>
    %95 = arith.subf %80, %94 : vector<1x32xf32>
    %cst_48 = arith.constant 9.99999974E-6 : f32
    %96 = vector.broadcast %cst_48 : f32 to vector<1x1xf32>
    %97 = arith.addf %93, %96 : vector<1x1xf32>
    %98 = math.rsqrt %97 : vector<1x1xf32>
    %99 = vector.broadcast %98 : vector<1x1xf32> to vector<1x32xf32>
    %100 = arith.mulf %99, %81 : vector<1x32xf32>
    %101 = arith.mulf %95, %100 : vector<1x32xf32>
    %102 = arith.addf %101, %82 : vector<1x32xf32>
    %103 = arith.truncf %102 : vector<1x32xf32> to vector<1x32xbf16>
    %c0_49 = arith.constant 0 : index
    %c0_50 = arith.constant 0 : index
    %104 = vector.load %arg14[%c0_49, %c0_50] : memref<32x128xbf16, #tpu.memory_space<vmem>>, vector<32x128xbf16>
    %cst_51 = arith.constant dense<0.000000e+00> : vector<1x128xf32>
    %105 = tpu.matmul %103, %104, %cst_51 {dimension_numbers = #tpu.dot_dimension_numbers<[1], [0], [0], [1], [0, 0, 1, 1], [], []>} : vector<1x32xbf16>, vector<32x128xbf16>, vector<1x128xf32> -> vector<1x128xf32>
    %c0_52 = arith.constant 0 : index
    %c0_53 = arith.constant 0 : index
    %106 = vector.load %arg15[%c0_52, %c0_53] : memref<1x128xf32, #tpu.memory_space<vmem>>, vector<1x128xf32>
    %107 = arith.addf %105, %106 : vector<1x128xf32>
    %cst_54 = arith.constant 5.000000e-01 : f32
    %108 = vector.broadcast %cst_54 : f32 to vector<1x128xf32>
    %109 = arith.mulf %108, %107 : vector<1x128xf32>
    %cst_55 = arith.constant 0.707106769 : f32
    %110 = vector.broadcast %cst_55 : f32 to vector<1x128xf32>
    %111 = arith.mulf %107, %110 : vector<1x128xf32>
    %112 = math.erf %111 : vector<1x128xf32>
    %cst_56 = arith.constant 1.000000e+00 : f32
    %113 = vector.broadcast %cst_56 : f32 to vector<1x128xf32>
    %114 = arith.addf %113, %112 : vector<1x128xf32>
    %115 = arith.mulf %109, %114 : vector<1x128xf32>
    %116 = arith.truncf %115 : vector<1x128xf32> to vector<1x128xbf16>
    %c0_57 = arith.constant 0 : index
    %c0_58 = arith.constant 0 : index
    %117 = vector.load %arg16[%c0_57, %c0_58] : memref<128x32xbf16, #tpu.memory_space<vmem>>, vector<128x32xbf16>
    %cst_59 = arith.constant dense<0.000000e+00> : vector<1x32xf32>
    %118 = tpu.matmul %116, %117, %cst_59 {dimension_numbers = #tpu.dot_dimension_numbers<[1], [0], [0], [1], [0, 0, 1, 1], [], []>} : vector<1x128xbf16>, vector<128x32xbf16>, vector<1x32xf32> -> vector<1x32xf32>
    %119 = arith.addf %80, %118 : vector<1x32xf32>
    %c0_60 = arith.constant 0 : index
    %c0_61 = arith.constant 0 : index
    %120 = vector.load %arg17[%c0_60, %c0_61] : memref<1x32xf32, #tpu.memory_space<vmem>>, vector<1x32xf32>
    %121 = arith.addf %119, %120 : vector<1x32xf32>
    %c0_62 = arith.constant 0 : index
    %c0_63 = arith.constant 0 : index
    %c0_64 = arith.constant 0 : index
    %122 = vector.load %arg1[%c0_62, %c0_63, %c0_64] : memref<1x8x32xf32, #tpu.memory_space<vmem>>, vector<1x8x32xf32>
    %c0_65 = arith.constant 0 : index
    %c0_66 = arith.constant 0 : index
    %c0_67 = arith.constant 0 : index
    %123 = vector.load %arg20[%c0_65, %c0_66, %c0_67] : memref<1x8x32xf32, #tpu.memory_space<vmem>>, vector<1x8x32xf32>
    tpu.vector_store %arg20[%c0_65, %c0_66, %c0_67], %122 {strides = array<i32>} : memref<1x8x32xf32, #tpu.memory_space<vmem>>, vector<1x8x32xf32>,
    %124 = vector.shape_cast %121 : vector<1x32xf32> to vector<1x1x32xf32>
    %c0_68 = arith.constant 0 : index
    %c0_69 = arith.constant 0 : index
    %c0_70 = arith.constant 0 : index
    %125 = vector.load %arg20[%c0_68, %c0_69, %c0_70] : memref<1x8x32xf32, #tpu.memory_space<vmem>>, vector<1x1x32xf32>
    tpu.vector_store %arg20[%c0_68, %c0_69, %c0_70], %124 {strides = array<i32>} : memref<1x8x32xf32, #tpu.memory_space<vmem>>, vector<1x1x32xf32>,
    return
  }
  func.func @transform_0(%arg0: i32) -> (i32, i32, i32) {
    %c0_i32 = arith.constant 0 : i32
    %c0_i32_0 = arith.constant 0 : i32
    %c0_i32_1 = arith.constant 0 : i32
    return %arg0, %c0_i32, %c0_i32_0 : i32, i32, i32
  }
  func.func @transform_1(%arg0: i32) -> (i32, i32) {
    %c0_i32 = arith.constant 0 : i32
    %c0_i32_0 = arith.constant 0 : i32
    %c0_i32_1 = arith.constant 0 : i32
    return %c0_i32, %c0_i32_0 : i32, i32
  }
  func.func @transform_2(%arg0: i32) -> (i32, i32) {
    %c0_i32 = arith.constant 0 : i32
    %c0_i32_0 = arith.constant 0 : i32
    %c0_i32_1 = arith.constant 0 : i32
    return %c0_i32, %c0_i32_0 : i32, i32
  }
  func.func @transform_3(%arg0: i32) -> (i32, i32) {
    %c0_i32 = arith.constant 0 : i32
    %c0_i32_0 = arith.constant 0 : i32
    %c0_i32_1 = arith.constant 0 : i32
    return %c0_i32, %c0_i32_0 : i32, i32
  }
  func.func @transform_4(%arg0: i32) -> (i32, i32) {
    %c0_i32 = arith.constant 0 : i32
    %c0_i32_0 = arith.constant 0 : i32
    %c0_i32_1 = arith.constant 0 : i32
    return %c0_i32, %c0_i32_0 : i32, i32
  }
  func.func @transform_5(%arg0: i32) -> (i32, i32) {
    %c0_i32 = arith.constant 0 : i32
    %c0_i32_0 = arith.constant 0 : i32
    %c0_i32_1 = arith.constant 0 : i32
    return %c0_i32, %c0_i32_0 : i32, i32
  }
  func.func @transform_6(%arg0: i32) -> (i32, i32) {
    %c0_i32 = arith.constant 0 : i32
    %c0_i32_0 = arith.constant 0 : i32
    %c0_i32_1 = arith.constant 0 : i32
    return %c0_i32, %c0_i32_0 : i32, i32
  }
  func.func @transform_7(%arg0: i32) -> (i32, i32) {
    %c0_i32 = arith.constant 0 : i32
    %c0_i32_0 = arith.constant 0 : i32
    %c0_i32_1 = arith.constant 0 : i32
    return %c0_i32, %c0_i32_0 : i32, i32
  }
  func.func @transform_8(%arg0: i32) -> (i32, i32) {
    %c0_i32 = arith.constant 0 : i32
    %c0_i32_0 = arith.constant 0 : i32
    %c0_i32_1 = arith.constant 0 : i32
    return %c0_i32, %c0_i32_0 : i32, i32
  }
  func.func @transform_9(%arg0: i32) -> (i32, i32) {
    %c0_i32 = arith.constant 0 : i32
    %c0_i32_0 = arith.constant 0 : i32
    %c0_i32_1 = arith.constant 0 : i32
    return %c0_i32, %c0_i32_0 : i32, i32
  }
  func.func @transform_10(%arg0: i32) -> (i32, i32) {
    %c0_i32 = arith.constant 0 : i32
    %c0_i32_0 = arith.constant 0 : i32
    %c0_i32_1 = arith.constant 0 : i32
    return %c0_i32, %c0_i32_0 : i32, i32
  }
  func.func @transform_11(%arg0: i32) -> (i32, i32) {
    %c0_i32 = arith.constant 0 : i32
    %c0_i32_0 = arith.constant 0 : i32
    %c0_i32_1 = arith.constant 0 : i32
    return %c0_i32, %c0_i32_0 : i32, i32
  }
  func.func @transform_12(%arg0: i32) -> (i32, i32) {
    %c0_i32 = arith.constant 0 : i32
    %c0_i32_0 = arith.constant 0 : i32
    %c0_i32_1 = arith.constant 0 : i32
    return %c0_i32, %c0_i32_0 : i32, i32
  }
  func.func @transform_13(%arg0: i32) -> (i32, i32) {
    %c0_i32 = arith.constant 0 : i32
    %c0_i32_0 = arith.constant 0 : i32
    %c0_i32_1 = arith.constant 0 : i32
    return %c0_i32, %c0_i32_0 : i32, i32
  }
  func.func @transform_14(%arg0: i32) -> (i32, i32) {
    %c0_i32 = arith.constant 0 : i32
    %c0_i32_0 = arith.constant 0 : i32
    %c0_i32_1 = arith.constant 0 : i32
    return %c0_i32, %c0_i32_0 : i32, i32
  }
  func.func @transform_15(%arg0: i32) -> (i32, i32) {
    %c0_i32 = arith.constant 0 : i32
    %c0_i32_0 = arith.constant 0 : i32
    %c0_i32_1 = arith.constant 0 : i32
    return %c0_i32, %c0_i32_0 : i32, i32
  }
  func.func @transform_16(%arg0: i32) -> (i32, i32) {
    %c0_i32 = arith.constant 0 : i32
    %c0_i32_0 = arith.constant 0 : i32
    %c0_i32_1 = arith.constant 0 : i32
    return %c0_i32, %c0_i32_0 : i32, i32
  }
  func.func @transform_17(%arg0: i32) -> (i32, i32) {
    %c0_i32 = arith.constant 0 : i32
    %c0_i32_0 = arith.constant 0 : i32
    %c0_i32_1 = arith.constant 0 : i32
    return %c0_i32, %c0_i32_0 : i32, i32
  }
  func.func @transform_18(%arg0: i32) -> (i32, i32) {
    %c0_i32 = arith.constant 0 : i32
    %c0_i32_0 = arith.constant 0 : i32
    %c0_i32_1 = arith.constant 0 : i32
    return %c0_i32, %c0_i32_0 : i32, i32
  }
  func.func @transform_19(%arg0: i32) -> (i32, i32, i32) {
    %c0_i32 = arith.constant 0 : i32
    %c0_i32_0 = arith.constant 0 : i32
    %c0_i32_1 = arith.constant 0 : i32
    return %arg0, %c0_i32, %c0_i32_0 : i32, i32, i32
  }
}

</mosaic_0001>

<llo_original>
// kernel: tpu_custom_call.1
$region0: #{tpu_custom_call.1}
  #allocation0 [shape = 'u32[]', space=smem, size = 0x4, offset = 0x4, fixed_abs, tag = 'smem constant byte address 0x4 - core index']
  #allocation1 [shape = 'u32[72,128]{1,0:T(1,128)}', space=vmem, size = 0x9000, scoped, tag = 'internal scratch']
  %s0 = inlined_call_operand.hbm [shape: f32[4,8,32], index: 0, kind: input, shape index: {}, may-alias: {0,19}]
  %s1 = inlined_call_operand.vmem [shape: f32[1,32], index: 1, kind: input, shape index: {}]
  %s2 = inlined_call_operand.vmem [shape: f32[1,32], index: 2, kind: input, shape index: {}]
  %s3 = inlined_call_operand.vmem [shape: f32[1,32], index: 3, kind: input, shape index: {}]
  %s4 = inlined_call_operand.vmem [shape: f32[1,32], index: 4, kind: input, shape index: {}]
  %s5 = inlined_call_operand.vmem [shape: bf16[32,32], index: 5, kind: input, shape index: {}]
  %s6 = inlined_call_operand.vmem [shape: f32[1,32], index: 6, kind: input, shape index: {}]
  %s7 = inlined_call_operand.vmem [shape: bf16[32,32], index: 7, kind: input, shape index: {}]
  %s8 = inlined_call_operand.vmem [shape: f32[1,32], index: 8, kind: input, shape index: {}]
  %s9 = inlined_call_operand.vmem [shape: bf16[32,32], index: 9, kind: input, shape index: {}]
  %s10 = inlined_call_operand.vmem [shape: f32[1,32], index: 10, kind: input, shape index: {}]
  %s11 = inlined_call_operand.vmem [shape: bf16[32,32], index: 11, kind: input, shape index: {}]
  %s12 = inlined_call_operand.vmem [shape: f32[1,32], index: 12, kind: input, shape index: {}]
  %s13 = inlined_call_operand.vmem [shape: bf16[32,128], index: 13, kind: input, shape index: {}]
  %s14 = inlined_call_operand.vmem [shape: f32[1,128], index: 14, kind: input, shape index: {}]
  %s15 = inlined_call_operand.vmem [shape: bf16[128,32], index: 15, kind: input, shape index: {}]
  %s16 = inlined_call_operand.vmem [shape: f32[1,32], index: 16, kind: input, shape index: {}]
  %s17 = inlined_call_operand.vmem [shape: bf16[32,4], index: 17, kind: input, shape index: {}]
  %s18 = inlined_call_operand.vmem [shape: bf16[4,32], index: 18, kind: input, shape index: {}]
  %s19 = inlined_call_operand.hbm [shape: f32[4,8,32], index: 19, kind: output, shape index: {}, may-alias: {0,19}]
  %s20 = sld [smem:[#allocation0]]
  $region113: #{tpu_custom_call.1} parent=0
    _
  %s22 = ssub.s32 1, %s20
  %s23 = scalar_select 0, %s22, %s20
  $region1: #{tpu_custom_call.1} parent=0
    #allocation2 [shape = 'u8[8192]{0}', space=vmem, size = 0x2000, scoped, tag = 'input window, operand 0']
    #allocation3 [shape = 's32[2]{0}', space=sflag, size = 0x8, scoped, tag = 'scoped memory for tpu_custom_call.1']
    #allocation4 [shape = 's32[2]{0}', space=sflag, size = 0x8, scoped, tag = 'scoped memory for tpu_custom_call.1']
    #allocation5 [shape = 'u8[8192]{0}', space=vmem, size = 0x2000, scoped, tag = 'output window, operand 0']
    %24 = vsyncpa [#allocation3], 0
    %s25 = scalar_lea.sflag [#allocation3], 1
    %26 = vsyncpa %s25, 0
    %27 = vsyncpa [#allocation4], 0
    %s28 = scalar_lea.sflag [#allocation4], 1
    %29 = vsyncpa %s28, 0
    loop: start=0, step=1, limit=6
    $region2: #{tpu_custom_call.1} parent=1 // loop_pre_header
      _
    $region3: #{tpu_custom_call.1} parent=1 // loop_header
      %s31 = sphi 0, %s35
      %p32 = scmp.ge.s32.totalorder %s31, 6
      %s41 = sphi 0, %s43
      %s44 = sphi 0, %s41
      %s45 = sphi 0, %s44
      %s61 = sphi 0, %s45
      %s65 = sphi 0, %s65
      %s67 = sphi 0, %s65
      %s68 = sphi 0, %s67
      %s82 = sphi 0, %s68
      %s86 = sphi 0, %s86
      %s88 = sphi 0, %s86
      %s89 = sphi 0, %s88
      %s103 = sphi 0, %s89
      %s107 = sphi 0, %s107
      %s109 = sphi 0, %s107
      %s110 = sphi 0, %s109
      %s124 = sphi 0, %s110
      %s128 = sphi 0, %s128
      %s130 = sphi 0, %s128
      %s131 = sphi 0, %s130
      %s145 = sphi 0, %s131
      %s149 = sphi 0, %s149
      %s151 = sphi 0, %s149
      %s152 = sphi 0, %s151
      %s166 = sphi 0, %s152
      %s170 = sphi 0, %s170
      %s172 = sphi 0, %s170
      %s173 = sphi 0, %s172
      %s187 = sphi 0, %s173
      %s191 = sphi 0, %s191
      %s193 = sphi 0, %s191
      %s194 = sphi 0, %s193
      %s208 = sphi 0, %s194
      %s212 = sphi 0, %s212
      %s214 = sphi 0, %s212
      %s215 = sphi 0, %s214
      %s229 = sphi 0, %s215
      %s233 = sphi 0, %s233
      %s235 = sphi 0, %s233
      %s236 = sphi 0, %s235
      %s250 = sphi 0, %s236
      %s254 = sphi 0, %s254
      %s256 = sphi 0, %s254
      %s257 = sphi 0, %s256
      %s271 = sphi 0, %s257
      %s275 = sphi 0, %s275
      %s277 = sphi 0, %s275
      %s278 = sphi 0, %s277
      %s292 = sphi 0, %s278
      %s296 = sphi 0, %s296
      %s298 = sphi 0, %s296
      %s299 = sphi 0, %s298
      %s313 = sphi 0, %s299
      %s317 = sphi 0, %s317
      %s319 = sphi 0, %s317
      %s320 = sphi 0, %s319
      %s334 = sphi 0, %s320
      %s338 = sphi 0, %s338
      %s340 = sphi 0, %s338
      %s341 = sphi 0, %s340
      %s355 = sphi 0, %s341
      %s359 = sphi 0, %s359
      %s361 = sphi 0, %s359
      %s362 = sphi 0, %s361
      %s376 = sphi 0, %s362
      %s380 = sphi 0, %s380
      %s382 = sphi 0, %s380
      %s383 = sphi 0, %s382
      %s397 = sphi 0, %s383
      %s401 = sphi 0, %s401
      %s403 = sphi 0, %s401
      %s404 = sphi 0, %s403
      %s418 = sphi 0, %s404
      %s422 = sphi 0, %s422
      %s424 = sphi 0, %s422
      %s425 = sphi 0, %s424
      %s439 = sphi 0, %s425
      %s445 = sphi 0, %s447
      %s448 = sphi 0, %s445
      %s449 = sphi 0, %s448
      %s465 = sphi 0, %s449
    $region4: #{tpu_custom_call.1} parent=1 // loop_header_branch
      %34 = sbr.rel (%p32) target = $region8
    $region5: #{tpu_custom_call.1} parent=1 // loop_body
      %s36 = ssub.s32 %s31, 1
      %s37 = ssub.s32 %s31, 2
      %s38 = sadd.s32 %s31, 1
      %s39 = ssub.s32 %s31, %s38
      %p40 = scmp.eq.s32.totalorder %s39, 0
      %s42 = sadd.s32 %s41, 1
      %s43 = scalar_select %p40, %s41, %s42
      %p46 = pneg %p40
      %p47 = scmp.eq.s32.totalorder %s31, 3
      %p48 = por %p46, %p47
      %p49 = scmp.ne.s32.totalorder %s41, %s44
      %p50 = scmp.eq.s32.totalorder %s31, 0
      %p51 = por %p49, %p50
      %p52 = scmp.ne.s32.totalorder %s41, %s44
      %p53 = scmp.eq.s32.totalorder %s36, 3
      %p54 = por %p52, %p53
      %p55 = scmp.ne.s32.totalorder %s44, %s45
      %p56 = scmp.eq.s32.totalorder %s36, 0
      %p57 = por %p55, %p56
      %p58 = scmp.ne.s32.totalorder %s44, %s45
      %p59 = scmp.eq.s32.totalorder %s37, 3
      %p60 = por %p58, %p59
      %p62 = scmp.ne.s32.totalorder %s45, %s61
      %p63 = scmp.eq.s32.totalorder %s37, 0
      %p64 = por %p62, %p63
      %s66 = sadd.s32 %s65, 1
      %p69 = scmp.eq.s32.totalorder %s31, 3
      %p70 = scmp.ne.s32.totalorder %s65, %s67
      %p71 = scmp.eq.s32.totalorder %s31, 0
      %p72 = por %p70, %p71
      %p73 = scmp.ne.s32.totalorder %s65, %s67
      %p74 = scmp.eq.s32.totalorder %s36, 3
      %p75 = por %p73, %p74
      %p76 = scmp.ne.s32.totalorder %s67, %s68
      %p77 = scmp.eq.s32.totalorder %s36, 0
      %p78 = por %p76, %p77
      %p79 = scmp.ne.s32.totalorder %s67, %s68
      %p80 = scmp.eq.s32.totalorder %s37, 3
      %p81 = por %p79, %p80
      %p83 = scmp.ne.s32.totalorder %s68, %s82
      %p84 = scmp.eq.s32.totalorder %s37, 0
      %p85 = por %p83, %p84
      %s87 = sadd.s32 %s86, 1
      %p90 = scmp.eq.s32.totalorder %s31, 3
      %p91 = scmp.ne.s32.totalorder %s86, %s88
      %p92 = scmp.eq.s32.totalorder %s31, 0
      %p93 = por %p91, %p92
      %p94 = scmp.ne.s32.totalorder %s86, %s88
      %p95 = scmp.eq.s32.totalorder %s36, 3
      %p96 = por %p94, %p95
      %p97 = scmp.ne.s32.totalorder %s88, %s89
      %p98 = scmp.eq.s32.totalorder %s36, 0
      %p99 = por %p97, %p98
      %p100 = scmp.ne.s32.totalorder %s88, %s89
      %p101 = scmp.eq.s32.totalorder %s37, 3
      %p102 = por %p100, %p101
      %p104 = scmp.ne.s32.totalorder %s89, %s103
      %p105 = scmp.eq.s32.totalorder %s37, 0
      %p106 = por %p104, %p105
      %s108 = sadd.s32 %s107, 1
      %p111 = scmp.eq.s32.totalorder %s31, 3
      %p112 = scmp.ne.s32.totalorder %s107, %s109
      %p113 = scmp.eq.s32.totalorder %s31, 0
      %p114 = por %p112, %p113
      %p115 = scmp.ne.s32.totalorder %s107, %s109
      %p116 = scmp.eq.s32.totalorder %s36, 3
      %p117 = por %p115, %p116
      %p118 = scmp.ne.s32.totalorder %s109, %s110
      %p119 = scmp.eq.s32.totalorder %s36, 0
      %p120 = por %p118, %p119
      %p121 = scmp.ne.s32.totalorder %s109, %s110
      %p122 = scmp.eq.s32.totalorder %s37, 3
      %p123 = por %p121, %p122
      %p125 = scmp.ne.s32.totalorder %s110, %s124
      %p126 = scmp.eq.s32.totalorder %s37, 0
      %p127 = por %p125, %p126
      %s129 = sadd.s32 %s128, 1
      %p132 = scmp.eq.s32.totalorder %s31, 3
      %p133 = scmp.ne.s32.totalorder %s128, %s130
      %p134 = scmp.eq.s32.totalorder %s31, 0
      %p135 = por %p133, %p134
      %p136 = scmp.ne.s32.totalorder %s128, %s130
      %p137 = scmp.eq.s32.totalorder %s36, 3
      %p138 = por %p136, %p137
      %p139 = scmp.ne.s32.totalorder %s130, %s131
      %p140 = scmp.eq.s32.totalorder %s36, 0
      %p141 = por %p139, %p140
      %p142 = scmp.ne.s32.totalorder %s130, %s131
      %p143 = scmp.eq.s32.totalorder %s37, 3
      %p144 = por %p142, %p143
      %p146 = scmp.ne.s32.totalorder %s131, %s145
      %p147 = scmp.eq.s32.totalorder %s37, 0
      %p148 = por %p146, %p147
      %s150 = sadd.s32 %s149, 1
      %p153 = scmp.eq.s32.totalorder %s31, 3
      %p154 = scmp.ne.s32.totalorder %s149, %s151
      %p155 = scmp.eq.s32.totalorder %s31, 0
      %p156 = por %p154, %p155
      %p157 = scmp.ne.s32.totalorder %s149, %s151
      %p158 = scmp.eq.s32.totalorder %s36, 3
      %p159 = por %p157, %p158
      %p160 = scmp.ne.s32.totalorder %s151, %s152
      %p161 = scmp.eq.s32.totalorder %s36, 0
      %p162 = por %p160, %p161
      %p163 = scmp.ne.s32.totalorder %s151, %s152
      %p164 = scmp.eq.s32.totalorder %s37, 3
      %p165 = por %p163, %p164
      %p167 = scmp.ne.s32.totalorder %s152, %s166
      %p168 = scmp.eq.s32.totalorder %s37, 0
      %p169 = por %p167, %p168
      %s171 = sadd.s32 %s170, 1
      %p174 = scmp.eq.s32.totalorder %s31, 3
      %p175 = scmp.ne.s32.totalorder %s170, %s172
      %p176 = scmp.eq.s32.totalorder %s31, 0
      %p177 = por %p175, %p176
      %p178 = scmp.ne.s32.totalorder %s170, %s172
      %p179 = scmp.eq.s32.totalorder %s36, 3
      %p180 = por %p178, %p179
      %p181 = scmp.ne.s32.totalorder %s172, %s173
      %p182 = scmp.eq.s32.totalorder %s36, 0
      %p183 = por %p181, %p182
      %p184 = scmp.ne.s32.totalorder %s172, %s173
      %p185 = scmp.eq.s32.totalorder %s37, 3
      %p186 = por %p184, %p185
      %p188 = scmp.ne.s32.totalorder %s173, %s187
      %p189 = scmp.eq.s32.totalorder %s37, 0
      %p190 = por %p188, %p189
      %s192 = sadd.s32 %s191, 1
      %p195 = scmp.eq.s32.totalorder %s31, 3
      %p196 = scmp.ne.s32.totalorder %s191, %s193
      %p197 = scmp.eq.s32.totalorder %s31, 0
      %p198 = por %p196, %p197
      %p199 = scmp.ne.s32.totalorder %s191, %s193
      %p200 = scmp.eq.s32.totalorder %s36, 3
      %p201 = por %p199, %p200
      %p202 = scmp.ne.s32.totalorder %s193, %s194
      %p203 = scmp.eq.s32.totalorder %s36, 0
      %p204 = por %p202, %p203
      %p205 = scmp.ne.s32.totalorder %s193, %s194
      %p206 = scmp.eq.s32.totalorder %s37, 3
      %p207 = por %p205, %p206
      %p209 = scmp.ne.s32.totalorder %s194, %s208
      %p210 = scmp.eq.s32.totalorder %s37, 0
      %p211 = por %p209, %p210
      %s213 = sadd.s32 %s212, 1
      %p216 = scmp.eq.s32.totalorder %s31, 3
      %p217 = scmp.ne.s32.totalorder %s212, %s214
      %p218 = scmp.eq.s32.totalorder %s31, 0
      %p219 = por %p217, %p218
      %p220 = scmp.ne.s32.totalorder %s212, %s214
      %p221 = scmp.eq.s32.totalorder %s36, 3
      %p222 = por %p220, %p221
      %p223 = scmp.ne.s32.totalorder %s214, %s215
      %p224 = scmp.eq.s32.totalorder %s36, 0
      %p225 = por %p223, %p224
      %p226 = scmp.ne.s32.totalorder %s214, %s215
      %p227 = scmp.eq.s32.totalorder %s37, 3
      %p228 = por %p226, %p227
      %p230 = scmp.ne.s32.totalorder %s215, %s229
      %p231 = scmp.eq.s32.totalorder %s37, 0
      %p232 = por %p230, %p231
      %s234 = sadd.s32 %s233, 1
      %p237 = scmp.eq.s32.totalorder %s31, 3
      %p238 = scmp.ne.s32.totalorder %s233, %s235
      %p239 = scmp.eq.s32.totalorder %s31, 0
      %p240 = por %p238, %p239
      %p241 = scmp.ne.s32.totalorder %s233, %s235
      %p242 = scmp.eq.s32.totalorder %s36, 3
      %p243 = por %p241, %p242
      %p244 = scmp.ne.s32.totalorder %s235, %s236
      %p245 = scmp.eq.s32.totalorder %s36, 0
      %p246 = por %p244, %p245
      %p247 = scmp.ne.s32.totalorder %s235, %s236
      %p248 = scmp.eq.s32.totalorder %s37, 3
      %p249 = por %p247, %p248
      %p251 = scmp.ne.s32.totalorder %s236, %s250
      %p252 = scmp.eq.s32.totalorder %s37, 0
      %p253 = por %p251, %p252
      %s255 = sadd.s32 %s254, 1
      %p258 = scmp.eq.s32.totalorder %s31, 3
      %p259 = scmp.ne.s32.totalorder %s254, %s256
      %p260 = scmp.eq.s32.totalorder %s31, 0
      %p261 = por %p259, %p260
      %p262 = scmp.ne.s32.totalorder %s254, %s256
      %p263 = scmp.eq.s32.totalorder %s36, 3
      %p264 = por %p262, %p263
      %p265 = scmp.ne.s32.totalorder %s256, %s257
      %p266 = scmp.eq.s32.totalorder %s36, 0
      %p267 = por %p265, %p266
      %p268 = scmp.ne.s32.totalorder %s256, %s257
      %p269 = scmp.eq.s32.totalorder %s37, 3
      %p270 = por %p268, %p269
      %p272 = scmp.ne.s32.totalorder %s257, %s271
      %p273 = scmp.eq.s32.totalorder %s37, 0
      %p274 = por %p272, %p273
      %s276 = sadd.s32 %s275, 1
      %p279 = scmp.eq.s32.totalorder %s31, 3
      %p280 = scmp.ne.s32.totalorder %s275, %s277
      %p281 = scmp.eq.s32.totalorder %s31, 0
      %p282 = por %p280, %p281
      %p283 = scmp.ne.s32.totalorder %s275, %s277
      %p284 = scmp.eq.s32.totalorder %s36, 3
      %p285 = por %p283, %p284
      %p286 = scmp.ne.s32.totalorder %s277, %s278
      %p287 = scmp.eq.s32.totalorder %s36, 0
      %p288 = por %p286, %p287
      %p289 = scmp.ne.s32.totalorder %s277, %s278
      %p290 = scmp.eq.s32.totalorder %s37, 3
      %p291 = por %p289, %p290
      %p293 = scmp.ne.s32.totalorder %s278, %s292
      %p294 = scmp.eq.s32.totalorder %s37, 0
      %p295 = por %p293, %p294
      %s297 = sadd.s32 %s296, 1
      %p300 = scmp.eq.s32.totalorder %s31, 3
      %p301 = scmp.ne.s32.totalorder %s296, %s298
      %p302 = scmp.eq.s32.totalorder %s31, 0
      %p303 = por %p301, %p302
      %p304 = scmp.ne.s32.totalorder %s296, %s298
      %p305 = scmp.eq.s32.totalorder %s36, 3
      %p306 = por %p304, %p305
      %p307 = scmp.ne.s32.totalorder %s298, %s299
      %p308 = scmp.eq.s32.totalorder %s36, 0
      %p309 = por %p307, %p308
      %p310 = scmp.ne.s32.totalorder %s298, %s299
      %p311 = scmp.eq.s32.totalorder %s37, 3
      %p312 = por %p310, %p311
      %p314 = scmp.ne.s32.totalorder %s299, %s313
      %p315 = scmp.eq.s32.totalorder %s37, 0
      %p316 = por %p314, %p315
      %s318 = sadd.s32 %s317, 1
      %p321 = scmp.eq.s32.totalorder %s31, 3
      %p322 = scmp.ne.s32.totalorder %s317, %s319
      %p323 = scmp.eq.s32.totalorder %s31, 0
      %p324 = por %p322, %p323
      %p325 = scmp.ne.s32.totalorder %s317, %s319
      %p326 = scmp.eq.s32.totalorder %s36, 3
      %p327 = por %p325, %p326
      %p328 = scmp.ne.s32.totalorder %s319, %s320
      %p329 = scmp.eq.s32.totalorder %s36, 0
      %p330 = por %p328, %p329
      %p331 = scmp.ne.s32.totalorder %s319, %s320
      %p332 = scmp.eq.s32.totalorder %s37, 3
      %p333 = por %p331, %p332
      %p335 = scmp.ne.s32.totalorder %s320, %s334
      %p336 = scmp.eq.s32.totalorder %s37, 0
      %p337 = por %p335, %p336
      %s339 = sadd.s32 %s338, 1
      %p342 = scmp.eq.s32.totalorder %s31, 3
      %p343 = scmp.ne.s32.totalorder %s338, %s340
      %p344 = scmp.eq.s32.totalorder %s31, 0
      %p345 = por %p343, %p344
      %p346 = scmp.ne.s32.totalorder %s338, %s340
      %p347 = scmp.eq.s32.totalorder %s36, 3
      %p348 = por %p346, %p347
      %p349 = scmp.ne.s32.totalorder %s340, %s341
      %p350 = scmp.eq.s32.totalorder %s36, 0
      %p351 = por %p349, %p350
      %p352 = scmp.ne.s32.totalorder %s340, %s341
      %p353 = scmp.eq.s32.totalorder %s37, 3
      %p354 = por %p352, %p353
      %p356 = scmp.ne.s32.totalorder %s341, %s355
      %p357 = scmp.eq.s32.totalorder %s37, 0
      %p358 = por %p356, %p357
      %s360 = sadd.s32 %s359, 1
      %p363 = scmp.eq.s32.totalorder %s31, 3
      %p364 = scmp.ne.s32.totalorder %s359, %s361
      %p365 = scmp.eq.s32.totalorder %s31, 0
      %p366 = por %p364, %p365
      %p367 = scmp.ne.s32.totalorder %s359, %s361
      %p368 = scmp.eq.s32.totalorder %s36, 3
      %p369 = por %p367, %p368
      %p370 = scmp.ne.s32.totalorder %s361, %s362
      %p371 = scmp.eq.s32.totalorder %s36, 0
      %p372 = por %p370, %p371
      %p373 = scmp.ne.s32.totalorder %s361, %s362
      %p374 = scmp.eq.s32.totalorder %s37, 3
      %p375 = por %p373, %p374
      %p377 = scmp.ne.s32.totalorder %s362, %s376
      %p378 = scmp.eq.s32.totalorder %s37, 0
      %p379 = por %p377, %p378
      %s381 = sadd.s32 %s380, 1
      %p384 = scmp.eq.s32.totalorder %s31, 3
      %p385 = scmp.ne.s32.totalorder %s380, %s382
      %p386 = scmp.eq.s32.totalorder %s31, 0
      %p387 = por %p385, %p386
      %p388 = scmp.ne.s32.totalorder %s380, %s382
      %p389 = scmp.eq.s32.totalorder %s36, 3
      %p390 = por %p388, %p389
      %p391 = scmp.ne.s32.totalorder %s382, %s383
      %p392 = scmp.eq.s32.totalorder %s36, 0
      %p393 = por %p391, %p392
      %p394 = scmp.ne.s32.totalorder %s382, %s383
      %p395 = scmp.eq.s32.totalorder %s37, 3
      %p396 = por %p394, %p395
      %p398 = scmp.ne.s32.totalorder %s383, %s397
      %p399 = scmp.eq.s32.totalorder %s37, 0
      %p400 = por %p398, %p399
      %s402 = sadd.s32 %s401, 1
      %p405 = scmp.eq.s32.totalorder %s31, 3
      %p406 = scmp.ne.s32.totalorder %s401, %s403
      %p407 = scmp.eq.s32.totalorder %s31, 0
      %p408 = por %p406, %p407
      %p409 = scmp.ne.s32.totalorder %s401, %s403
      %p410 = scmp.eq.s32.totalorder %s36, 3
      %p411 = por %p409, %p410
      %p412 = scmp.ne.s32.totalorder %s403, %s404
      %p413 = scmp.eq.s32.totalorder %s36, 0
      %p414 = por %p412, %p413
      %p415 = scmp.ne.s32.totalorder %s403, %s404
      %p416 = scmp.eq.s32.totalorder %s37, 3
      %p417 = por %p415, %p416
      %p419 = scmp.ne.s32.totalorder %s404, %s418
      %p420 = scmp.eq.s32.totalorder %s37, 0
      %p421 = por %p419, %p420
      %s423 = sadd.s32 %s422, 1
      %p426 = scmp.eq.s32.totalorder %s31, 3
      %p427 = scmp.ne.s32.totalorder %s422, %s424
      %p428 = scmp.eq.s32.totalorder %s31, 0
      %p429 = por %p427, %p428
      %p430 = scmp.ne.s32.totalorder %s422, %s424
      %p431 = scmp.eq.s32.totalorder %s36, 3
      %p432 = por %p430, %p431
      %p433 = scmp.ne.s32.totalorder %s424, %s425
      %p434 = scmp.eq.s32.totalorder %s36, 0
      %p435 = por %p433, %p434
      %p436 = scmp.ne.s32.totalorder %s424, %s425
      %p437 = scmp.eq.s32.totalorder %s37, 3
      %p438 = por %p436, %p437
      %p440 = scmp.ne.s32.totalorder %s425, %s439
      %p441 = scmp.eq.s32.totalorder %s37, 0
      %p442 = por %p440, %p441
      %s443 = ssub.s32 %s31, %s38
      %p444 = scmp.eq.s32.totalorder %s443, 0
      %s446 = sadd.s32 %s445, 1
      %s447 = scalar_select %p444, %s445, %s446
      %p450 = pneg %p444
      %p451 = scmp.eq.s32.totalorder %s31, 3
      %p452 = por %p450, %p451
      %p453 = scmp.ne.s32.totalorder %s445, %s448
      %p454 = scmp.eq.s32.totalorder %s31, 0
      %p455 = por %p453, %p454
      %p456 = scmp.ne.s32.totalorder %s445, %s448
      %p457 = scmp.eq.s32.totalorder %s36, 3
      %p458 = por %p456, %p457
      %p459 = scmp.ne.s32.totalorder %s448, %s449
      %p460 = scmp.eq.s32.totalorder %s36, 0
      %p461 = por %p459, %p460
      %p462 = scmp.ne.s32.totalorder %s448, %s449
      %p463 = scmp.eq.s32.totalorder %s37, 3
      %p464 = por %p462, %p463
      %p466 = scmp.ne.s32.totalorder %s449, %s465
      %p467 = scmp.eq.s32.totalorder %s37, 0
      %p468 = por %p466, %p467
      %p469 = scmp.le.s32.totalorder 1, %s31
      %p470 = scmp.lt.s32.totalorder %s31, 5
      %p471 = pnand %p469, %p470
      %p472 = pneg %p471
      // Predicated region
      $region9: #{tpu_custom_call.1} parent=5 // pred_check
        _
      $region10: #{tpu_custom_call.1} parent=5 // pred_check_branch
        %474 = sbr.rel (%p471) target = $region12
      $region11: #{tpu_custom_call.1} parent=5 // pred_region
        %s475 = ssub.s32 %s31, 1
        // Predicated region
        $region13: #{tpu_custom_call.1} parent=11 // pred_check
          %p476 = pneg %p78
        $region14: #{tpu_custom_call.1} parent=11 // pred_check_branch
          %478 = sbr.rel (%p476) target = $region16
        $region15: #{tpu_custom_call.1} parent=11 // pred_region
          _
        $region16: #{tpu_custom_call.1} parent=11 // pred_fallthru
          _
        // Predicated region
        $region17: #{tpu_custom_call.1} parent=11 // pred_check
          %p479 = pneg %p99
        $region18: #{tpu_custom_call.1} parent=11 // pred_check_branch
          %481 = sbr.rel (%p479) target = $region20
        $region19: #{tpu_custom_call.1} parent=11 // pred_region
          _
        $region20: #{tpu_custom_call.1} parent=11 // pred_fallthru
          _
        // Predicated region
        $region21: #{tpu_custom_call.1} parent=11 // pred_check
          %p482 = pneg %p120
        $region22: #{tpu_custom_call.1} parent=11 // pred_check_branch
          %484 = sbr.rel (%p482) target = $region24
        $region23: #{tpu_custom_call.1} parent=11 // pred_region
          _
        $region24: #{tpu_custom_call.1} parent=11 // pred_fallthru
          _
        // Predicated region
        $region25: #{tpu_custom_call.1} parent=11 // pred_check
          %p485 = pneg %p141
        $region26: #{tpu_custom_call.1} parent=11 // pred_check_branch
          %487 = sbr.rel (%p485) target = $region28
        $region27: #{tpu_custom_call.1} parent=11 // pred_region
          _
        $region28: #{tpu_custom_call.1} parent=11 // pred_fallthru
          _
        // Predicated region
        $region29: #{tpu_custom_call.1} parent=11 // pred_check
          %p488 = pneg %p162
        $region30: #{tpu_custom_call.1} parent=11 // pred_check_branch
          %490 = sbr.rel (%p488) target = $region32
        $region31: #{tpu_custom_call.1} parent=11 // pred_region
          _
        $region32: #{tpu_custom_call.1} parent=11 // pred_fallthru
          _
        // Predicated region
        $region33: #{tpu_custom_call.1} parent=11 // pred_check
          %p491 = pneg %p183
        $region34: #{tpu_custom_call.1} parent=11 // pred_check_branch
          %493 = sbr.rel (%p491) target = $region36
        $region35: #{tpu_custom_call.1} parent=11 // pred_region
          _
        $region36: #{tpu_custom_call.1} parent=11 // pred_fallthru
          _
        // Predicated region
        $region37: #{tpu_custom_call.1} parent=11 // pred_check
          %p494 = pneg %p204
        $region38: #{tpu_custom_call.1} parent=11 // pred_check_branch
          %496 = sbr.rel (%p494) target = $region40
        $region39: #{tpu_custom_call.1} parent=11 // pred_region
          _
        $region40: #{tpu_custom_call.1} parent=11 // pred_fallthru
          _
        // Predicated region
        $region41: #{tpu_custom_call.1} parent=11 // pred_check
          %p497 = pneg %p225
        $region42: #{tpu_custom_call.1} parent=11 // pred_check_branch
          %499 = sbr.rel (%p497) target = $region44
        $region43: #{tpu_custom_call.1} parent=11 // pred_region
          _
        $region44: #{tpu_custom_call.1} parent=11 // pred_fallthru
          _
        // Predicated region
        $region45: #{tpu_custom_call.1} parent=11 // pred_check
          %p500 = pneg %p246
        $region46: #{tpu_custom_call.1} parent=11 // pred_check_branch
          %502 = sbr.rel (%p500) target = $region48
        $region47: #{tpu_custom_call.1} parent=11 // pred_region
          _
        $region48: #{tpu_custom_call.1} parent=11 // pred_fallthru
          _
        // Predicated region
        $region49: #{tpu_custom_call.1} parent=11 // pred_check
          %p503 = pneg %p267
        $region50: #{tpu_custom_call.1} parent=11 // pred_check_branch
          %505 = sbr.rel (%p503) target = $region52
        $region51: #{tpu_custom_call.1} parent=11 // pred_region
          _
        $region52: #{tpu_custom_call.1} parent=11 // pred_fallthru
          _
        // Predicated region
        $region53: #{tpu_custom_call.1} parent=11 // pred_check
          %p506 = pneg %p288
        $region54: #{tpu_custom_call.1} parent=11 // pred_check_branch
          %508 = sbr.rel (%p506) target = $region56
        $region55: #{tpu_custom_call.1} parent=11 // pred_region
          _
        $region56: #{tpu_custom_call.1} parent=11 // pred_fallthru
          _
        // Predicated region
        $region57: #{tpu_custom_call.1} parent=11 // pred_check
          %p509 = pneg %p309
        $region58: #{tpu_custom_call.1} parent=11 // pred_check_branch
          %511 = sbr.rel (%p509) target = $region60
        $region59: #{tpu_custom_call.1} parent=11 // pred_region
          _
        $region60: #{tpu_custom_call.1} parent=11 // pred_fallthru
          _
        // Predicated region
        $region61: #{tpu_custom_call.1} parent=11 // pred_check
          %p512 = pneg %p330
        $region62: #{tpu_custom_call.1} parent=11 // pred_check_branch
          %514 = sbr.rel (%p512) target = $region64
        $region63: #{tpu_custom_call.1} parent=11 // pred_region
          _
        $region64: #{tpu_custom_call.1} parent=11 // pred_fallthru
          _
        // Predicated region
        $region65: #{tpu_custom_call.1} parent=11 // pred_check
          %p515 = pneg %p351
        $region66: #{tpu_custom_call.1} parent=11 // pred_check_branch
          %517 = sbr.rel (%p515) target = $region68
        $region67: #{tpu_custom_call.1} parent=11 // pred_region
          _
        $region68: #{tpu_custom_call.1} parent=11 // pred_fallthru
          _
        // Predicated region
        $region69: #{tpu_custom_call.1} parent=11 // pred_check
          %p518 = pneg %p372
        $region70: #{tpu_custom_call.1} parent=11 // pred_check_branch
          %520 = sbr.rel (%p518) target = $region72
        $region71: #{tpu_custom_call.1} parent=11 // pred_region
          _
        $region72: #{tpu_custom_call.1} parent=11 // pred_fallthru
          _
        // Predicated region
        $region73: #{tpu_custom_call.1} parent=11 // pred_check
          %p521 = pneg %p393
        $region74: #{tpu_custom_call.1} parent=11 // pred_check_branch
          %523 = sbr.rel (%p521) target = $region76
        $region75: #{tpu_custom_call.1} parent=11 // pred_region
          _
        $region76: #{tpu_custom_call.1} parent=11 // pred_fallthru
          _
        // Predicated region
        $region77: #{tpu_custom_call.1} parent=11 // pred_check
          %p524 = pneg %p414
        $region78: #{tpu_custom_call.1} parent=11 // pred_check_branch
          %526 = sbr.rel (%p524) target = $region80
        $region79: #{tpu_custom_call.1} parent=11 // pred_region
          _
        $region80: #{tpu_custom_call.1} parent=11 // pred_fallthru
          _
        // Predicated region
        $region81: #{tpu_custom_call.1} parent=11 // pred_check
          %p527 = pneg %p435
        $region82: #{tpu_custom_call.1} parent=11 // pred_check_branch
          %529 = sbr.rel (%p527) target = $region84
        $region83: #{tpu_custom_call.1} parent=11 // pred_region
          _
        $region84: #{tpu_custom_call.1} parent=11 // pred_fallthru
          _
      $region12: #{tpu_custom_call.1} parent=5 // pred_fallthru
        _
      %p530 = scmp.lt.s32.totalorder %s31, 4
      // Predicated region
      $region85: #{tpu_custom_call.1} parent=5 // pred_check
        %p531 = pneg %p530
      $region86: #{tpu_custom_call.1} parent=5 // pred_check_branch
        %533 = sbr.rel (%p531) target = $region88
      $region87: #{tpu_custom_call.1} parent=5 // pred_region
        // Predicated region
        $region89: #{tpu_custom_call.1} parent=87 // pred_check
          %p534 = pneg %p51
        $region90: #{tpu_custom_call.1} parent=87 // pred_check_branch
          %536 = sbr.rel (%p534) target = $region92
        $region91: #{tpu_custom_call.1} parent=87 // pred_region
          %s537 = sand.u32 %s41, 1
          %s538 = scalar_lea.sflag [#allocation3], %s537
          %s539 = sand.u32 %s41, 1
          %s540 = smul.addr %s539, 8
          %s541 = scalar_lea.vmem [#allocation2], %s540
          %543 = vsyncadd %s538, 0
          %s544 = smul.addr %s31, 8
          %s545 = scalar_lea.hbm %s0, %s544
          %s547 = sshll.u32 %s545, 4
          %s548 = int_to_ptr.hbm [resolvable:$true] %s547
          %s549 = sshll.u32 %s541, 4
          %s550 = int_to_ptr.vmem [resolvable:$true] %s549
          %552 = dma.hbm_to_vmem [thread:$0]  %s548, 128, %s550, %s538
        $region92: #{tpu_custom_call.1} parent=87 // pred_fallthru
          _
      $region88: #{tpu_custom_call.1} parent=5 // pred_fallthru
        _
      %p553 = scmp.le.s32.totalorder 1, %s31
      %p554 = scmp.lt.s32.totalorder %s31, 5
      %p555 = pnand %p553, %p554
      %p556 = pneg %p555
      // Predicated region
      $region93: #{tpu_custom_call.1} parent=5 // pred_check
        _
      $region94: #{tpu_custom_call.1} parent=5 // pred_check_branch
        %558 = sbr.rel (%p555) target = $region96
      $region95: #{tpu_custom_call.1} parent=5 // pred_region
        %s559 = ssub.s32 %s31, 1
        %s560 = sand.u32 %s44, 1
        %s561 = scalar_lea.sflag [#allocation3], %s560
        %s562 = sand.u32 %s44, 1
        %s563 = smul.addr %s562, 8
        %s564 = scalar_lea.vmem [#allocation2], %s563
        // Predicated region
        $region97: #{tpu_custom_call.1} parent=95 // pred_check
          %p565 = pneg %p57
        $region98: #{tpu_custom_call.1} parent=95 // pred_check_branch
          %567 = sbr.rel (%p565) target = $region100
        $region99: #{tpu_custom_call.1} parent=95 // pred_region
          %569 = dma.done %s561, 128
        $region100: #{tpu_custom_call.1} parent=95 // pred_fallthru
          _
        %s570 = sand.u32 %s44, 1
        %s571 = scalar_lea.sflag [#allocation3], %s570
        %s572 = sand.u32 %s44, 1
        %s573 = smul.addr %s572, 8
        %s574 = scalar_lea.vmem [#allocation2], %s573
        %p575 = pneg %p57
        %p576 = pneg %p54
        %p577 = pneg %p78
        %p578 = pneg %p75
        %p579 = pneg %p99
        %p580 = pneg %p96
        %p581 = pneg %p120
        %p582 = pneg %p117
        %p583 = pneg %p141
        %p584 = pneg %p138
        %p585 = pneg %p162
        %p586 = pneg %p159
        %p587 = pneg %p183
        %p588 = pneg %p180
        %p589 = pneg %p204
        %p590 = pneg %p201
        %p591 = pneg %p225
        %p592 = pneg %p222
        %p593 = pneg %p246
        %p594 = pneg %p243
        %p595 = pneg %p267
        %p596 = pneg %p264
        %p597 = pneg %p288
        %p598 = pneg %p285
        %p599 = pneg %p309
        %p600 = pneg %p306
        %p601 = pneg %p330
        %p602 = pneg %p327
        %p603 = pneg %p351
        %p604 = pneg %p348
        %p605 = pneg %p372
        %p606 = pneg %p369
        %p607 = pneg %p393
        %p608 = pneg %p390
        %p609 = pneg %p414
        %p610 = pneg %p411
        %p611 = pneg %p435
        %p612 = pneg %p432
        %p613 = pneg %p461
        %p614 = pneg %p458
        %s615 = sand.u32 %s448, 1
        %s616 = scalar_lea.sflag [#allocation4], %s615
        %s617 = sand.u32 %s448, 1
        %s618 = smul.addr %s617, 8
        %s619 = scalar_lea.vmem [#allocation5], %s618
        %v621 = vld [vmem:[%s564] sm:$0xff]
        %v622 = vld [vmem:[%s1] sm:$0x1]
        %v623 = vld [vmem:[%s2] sm:$0x1]
        %vm624 = vcmask 261120
        %v625 = vsel %vm624, %v621, 0.0
        %626 = vadd.xlane.f32.xlu0 %v625
        %v627 = vpop.xlane.xlu0 %626
        %v628 = vrcp.pop 32.0
        %v629 = vmul.f32 32.0, %v628
        %v630 = vsub.f32 1.0, %v629
        %v631 = vmul.f32 %v628, %v630
        %v632 = vadd.f32 %v628, %v631
        %vm633 = vweird.f32 %v628
        %v634 = vsel %vm633, %v628, %v632
        %v635 = vmul.f32 %v627, %v634
        %v636 = vmul.f32 %v621, %v621
        %v637 = vsel %vm624, %v636, 0.0
        %638 = vadd.xlane.f32.xlu0 %v637
        %v639 = vpop.xlane.xlu0 %638
        %v640 = vmul.f32 %v639, %v634
        %v641 = vmul.f32 %v635, %v635
        %v642 = vsub.f32 %v640, %v641
        %v643 = vsub.f32 %v621, %v635
        %v644 = vadd.f32 %v642, 1e-05
        %v645 = vrsqrt.pop %v644
        %v646 = vmul.f32 %v645, %v644
        %v647 = vmul.f32 %v646, %v645
        %v648 = vmul.f32 0.5, %v647
        %v649 = vsub.f32 1.5, %v648
        %v650 = vmul.f32 %v645, %v649
        %vm651 = vweird.f32 %v644
        %vm652 = vweird.f32 %v645
        %vm653 = vmor %vm651, %vm652
        %v654 = vsel %vm653, %v645, %v650
        %v656 = vperm.slane %v622, 0
        %v658 = vmul.f32 %v654, %v656
        %v659 = vmul.f32 %v643, %v658
        %v661 = vperm.slane %v623, 0
        %v663 = vadd.f32 %v659, %v661
        %v664 = vpack.c.bf16 %v663, %v663
        %v665 = vld [vmem:[%s5] sm:$0xf]
        %v666 = vld [vmem:[%s5 + $0x4] sm:$0xf]
        %v667 = vld [vmem:[%s5 + $0x8] sm:$0xf]
        %v668 = vld [vmem:[%s5 + $0xc] sm:$0xf]
        %v669 = vld [vmem:[%s6] sm:$0x1]
        %v671 = vperm.slane %v669, 0
        %v677 = vunpack.c.l.b16 %v665
        %v678 = vunpack.c.l.b16 %v666
        %v679 = vunpack.c.l.b16 %v667
        %v680 = vunpack.c.l.b16 %v668
        %v681 = vpack.c.b16 %v678, %v677
        %v682 = vpack.c.b16 %v680, %v679
        %v686 = vsel %vm624, %v664, 0
        %688 = vmatpush.bf16.msra.mxu0 0
        %689 = vmatpush.bf16.msra.mxu0 0
        %690 = vmatpush.bf16.msra.mxu0 0
        %691 = vmatpush.bf16.msra.mxu0 0
        %692 = vmatpush.bf16.msra.mxu0 0
        %693 = vmatpush.bf16.msra.mxu0 0
        %694 = vmatpush.bf16.msra.mxu0 %v682
        %695 = vmatpush.bf16.msra.mxu0 %v681
        %696 = vmatmul.bf16.gmra.mxu0 %v686
        %v697 = vpop.f32.mrf.mxu0
        %v698 = vadd.f32 %v671, %v697
        %v699 = vpop.f32.mrf.mxu0
        %700 = vdwg.mxu0
        %v701 = vld [vmem:[%s7] sm:$0xf]
        %v702 = vld [vmem:[%s7 + $0x4] sm:$0xf]
        %v703 = vld [vmem:[%s7 + $0x8] sm:$0xf]
        %v704 = vld [vmem:[%s7 + $0xc] sm:$0xf]
        %v705 = vld [vmem:[%s8] sm:$0x1]
        %v707 = vperm.slane %v705, 0
        %v713 = vunpack.c.l.b16 %v701
        %v714 = vunpack.c.l.b16 %v702
        %v715 = vunpack.c.l.b16 %v703
        %v716 = vunpack.c.l.b16 %v704
        %v717 = vpack.c.b16 %v714, %v713
        %v718 = vpack.c.b16 %v716, %v715
        %721 = vmatpush.bf16.msra.mxu0 0
        %722 = vmatpush.bf16.msra.mxu0 0
        %723 = vmatpush.bf16.msra.mxu0 0
        %724 = vmatpush.bf16.msra.mxu0 0
        %725 = vmatpush.bf16.msra.mxu0 0
        %726 = vmatpush.bf16.msra.mxu0 0
        %727 = vmatpush.bf16.msra.mxu0 %v718
        %728 = vmatpush.bf16.msra.mxu0 %v717
        %729 = vmatmul.bf16.gmra.mxu0 %v686
        %v730 = vpop.f32.mrf.mxu0
        %v731 = vadd.f32 %v707, %v730
        %v732 = vpop.f32.mrf.mxu0
        %733 = vdwg.mxu0
        %v734 = vld [vmem:[%s9] sm:$0xf]
        %v735 = vld [vmem:[%s9 + $0x4] sm:$0xf]
        %v736 = vld [vmem:[%s9 + $0x8] sm:$0xf]
        %v737 = vld [vmem:[%s9 + $0xc] sm:$0xf]
        %v738 = vld [vmem:[%s10] sm:$0x1]
        %v743 = vunpack.c.l.b16 %v734
        %v744 = vunpack.c.l.b16 %v735
        %v745 = vunpack.c.l.b16 %v736
        %v746 = vunpack.c.l.b16 %v737
        %v747 = vpack.c.b16 %v744, %v743
        %v748 = vpack.c.b16 %v746, %v745
        %751 = vmatpush.bf16.msra.mxu0 0
        %752 = vmatpush.bf16.msra.mxu0 0
        %753 = vmatpush.bf16.msra.mxu0 0
        %754 = vmatpush.bf16.msra.mxu0 0
        %755 = vmatpush.bf16.msra.mxu0 0
        %756 = vmatpush.bf16.msra.mxu0 0
        %757 = vmatpush.bf16.msra.mxu0 %v748
        %758 = vmatpush.bf16.msra.mxu0 %v747
        %759 = vmatmul.bf16.gmra.mxu0 %v686
        %v760 = vpop.f32.mrf.mxu0
        %v761 = vadd.f32 %v738, %v760
        %v762 = vpop.f32.mrf.mxu0
        %763 = vdwg.mxu0
        %v764 = vperm.slane %v761, 0
        %v765 = vmul.f32 %v698, %v764
        %v766 = vpack.c.bf16 %v765, %v765
        %v767 = vld [vmem:[%s17] sm:$0xf]
        %v768 = vld [vmem:[%s17 + $0x4] sm:$0xf]
        %v769 = vld [vmem:[%s17 + $0x8] sm:$0xf]
        %v770 = vld [vmem:[%s17 + $0xc] sm:$0xf]
        %v775 = vunpack.c.l.b16 %v767
        %v776 = vunpack.c.l.b16 %v768
        %v777 = vunpack.c.l.b16 %v769
        %v778 = vunpack.c.l.b16 %v770
        %v779 = vpack.c.b16 %v776, %v775
        %v780 = vpack.c.b16 %v778, %v777
        %v784 = vsel %vm624, %v766, 0
        %786 = vmatpush.bf16.msra.mxu0 0
        %787 = vmatpush.bf16.msra.mxu0 0
        %788 = vmatpush.bf16.msra.mxu0 0
        %789 = vmatpush.bf16.msra.mxu0 0
        %790 = vmatpush.bf16.msra.mxu0 0
        %791 = vmatpush.bf16.msra.mxu0 0
        %792 = vmatpush.bf16.msra.mxu0 %v780
        %793 = vmatpush.bf16.msra.mxu0 %v779
        %794 = vmatmul.bf16.gmra.mxu0 %v784
        %v795 = vpop.f32.mrf.mxu0
        %v796 = vadd.f32 0.0, %v795
        %v797 = vpop.f32.mrf.mxu0
        %798 = vdwg.mxu0
        %vm799 = vcmask 31744
        %v800 = vsel %vm799, %v796, -inf
        %v801 = vrot.slane %v800, 4
        %v802 = vmax.f32 %v800, %v801
        %v803 = vrot.slane %v802, 2
        %v804 = vmax.f32 %v802, %v803
        %v805 = vrot.slane %v804, 1
        %v806 = vmax.f32 %v804, %v805
        %v807 = vsub.f32 %v796, %v806
        %v808 = vmul.f32 %v807, 1.442695
        %v809 = vpow.pop %v808
        %v810 = vsel %vm799, %v809, 0.0
        %v811 = vrot.slane %v810, 4
        %v812 = vadd.f32 %v810, %v811
        %v813 = vrot.slane %v812, 2
        %v814 = vadd.f32 %v812, %v813
        %v815 = vrot.slane %v814, 1
        %v816 = vadd.f32 %v814, %v815
        %v817 = vrcp.pop %v816
        %v818 = vmul.f32 %v816, %v817
        %v819 = vsub.f32 1.0, %v818
        %v820 = vmul.f32 %v817, %v819
        %v821 = vadd.f32 %v817, %v820
        %vm822 = vweird.f32 %v816
        %vm823 = vweird.f32 %v817
        %vm824 = vmor %vm822, %vm823
        %v825 = vsel %vm824, %v817, %v821
        %v826 = vand.u32 2147483647, %v816
        %vm827 = vcmp.eq.f32.partialorder %v826, 8.507059e+37
        %v828 = vand.u32 %v816, 2147483648
        %v829 = vor.u32 1.1754944e-38, %v828
        %v830 = vsel %vm827, %v829, %v825
        %v831 = vmul.f32 1.0, %v830
        %v832 = vmul.f32 %v809, %v831
        %v833 = vpack.c.bf16 %v832, %v832
        %v834 = vld [vmem:[%s18] sm:$0x3]
        %v836 = vsel %vm799, %v833, 0
        %vm838 = vcmask 1041408
        %v840 = vsel %vm838, %v834, 0
        %842 = vmatpush.bf16.msra.mxu0 0
        %843 = vmatpush.bf16.msra.mxu0 0
        %844 = vmatpush.bf16.msra.mxu0 0
        %845 = vmatpush.bf16.msra.mxu0 0
        %846 = vmatpush.bf16.msra.mxu0 0
        %847 = vmatpush.bf16.msra.mxu0 0
        %848 = vmatpush.bf16.msra.mxu0 0
        %849 = vmatpush.bf16.msra.mxu0 %v840
        %850 = vmatmul.bf16.gmra.mxu0 %v836
        %v851 = vpop.f32.mrf.mxu0
        %v852 = vadd.f32 0.0, %v851
        %v853 = vpop.f32.mrf.mxu0
        %854 = vdwg.mxu0
        %v855 = vmul.f32 %v852, %v731
        %v856 = vsel %vm624, %v855, 0.0
        %v857 = vrot.slane %v856, 4
        %v858 = vadd.f32 %v856, %v857
        %v859 = vrot.slane %v858, 2
        %v860 = vadd.f32 %v858, %v859
        %v861 = vrot.slane %v860, 1
        %v862 = vadd.f32 %v860, %v861
        %v863 = vpack.c.bf16 %v862, %v862
        %v864 = vld [vmem:[%s11] sm:$0xf]
        %v865 = vld [vmem:[%s11 + $0x4] sm:$0xf]
        %v866 = vld [vmem:[%s11 + $0x8] sm:$0xf]
        %v867 = vld [vmem:[%s11 + $0xc] sm:$0xf]
        %v868 = vld [vmem:[%s12] sm:$0x1]
        %v873 = vunpack.c.l.b16 %v864
        %v874 = vunpack.c.l.b16 %v865
        %v875 = vunpack.c.l.b16 %v866
        %v876 = vunpack.c.l.b16 %v867
        %v877 = vpack.c.b16 %v874, %v873
        %v878 = vpack.c.b16 %v876, %v875
        %v882 = vsel %vm624, %v863, 0
        %884 = vmatpush.bf16.msra.mxu0 0
        %885 = vmatpush.bf16.msra.mxu0 0
        %886 = vmatpush.bf16.msra.mxu0 0
        %887 = vmatpush.bf16.msra.mxu0 0
        %888 = vmatpush.bf16.msra.mxu0 0
        %889 = vmatpush.bf16.msra.mxu0 0
        %890 = vmatpush.bf16.msra.mxu0 %v878
        %891 = vmatpush.bf16.msra.mxu0 %v877
        %892 = vmatmul.bf16.gmra.mxu0 %v882
        %v893 = vpop.f32.mrf.mxu0
        %v894 = vadd.f32 %v868, %v893
        %v895 = vpop.f32.mrf.mxu0
        %896 = vdwg.mxu0
        %v897 = vadd.f32 %v621, %v894
        %v898 = vld [vmem:[%s3] sm:$0x1]
        %v899 = vld [vmem:[%s4] sm:$0x1]
        %vm900 = vcmask 253952
        %v901 = vsel %vm900, %v897, 0.0
        %902 = vadd.xlane.f32.xlu0 %v901
        %v903 = vpop.xlane.xlu0 %902
        %v904 = vmul.f32 %v903, %v634
        %v905 = vmul.f32 %v897, %v897
        %v906 = vsel %vm900, %v905, 0.0
        %907 = vadd.xlane.f32.xlu0 %v906
        %v908 = vpop.xlane.xlu0 %907
        %v909 = vmul.f32 %v908, %v634
        %v910 = vmul.f32 %v904, %v904
        %v911 = vsub.f32 %v909, %v910
        %v912 = vsub.f32 %v897, %v904
        %v913 = vadd.f32 %v911, 1e-05
        %v914 = vrsqrt.pop %v913
        %v915 = vmul.f32 %v914, %v913
        %v916 = vmul.f32 %v915, %v914
        %v917 = vmul.f32 0.5, %v916
        %v918 = vsub.f32 1.5, %v917
        %v919 = vmul.f32 %v914, %v918
        %vm920 = vweird.f32 %v913
        %vm921 = vweird.f32 %v914
        %vm922 = vmor %vm920, %vm921
        %v923 = vsel %vm922, %v914, %v919
        %v924 = vmul.f32 %v923, %v898
        %v925 = vmul.f32 %v912, %v924
        %v926 = vadd.f32 %v925, %v899
        %v927 = vpack.c.bf16 %v926, %v926
        %v928 = vld [vmem:[%s13] sm:$0xf]
        %v929 = vld [vmem:[%s13 + $0x4] sm:$0xf]
        %v930 = vld [vmem:[%s13 + $0x8] sm:$0xf]
        %v931 = vld [vmem:[%s13 + $0xc] sm:$0xf]
        %v932 = vld [vmem:[%s14] sm:$0x1]
        %v937 = vunpack.c.l.b16 %v928
        %v938 = vunpack.c.l.b16 %v929
        %v939 = vunpack.c.l.b16 %v930
        %v940 = vunpack.c.l.b16 %v931
        %v941 = vpack.c.b16 %v938, %v937
        %v942 = vpack.c.b16 %v940, %v939
        %v946 = vsel %vm624, %v927, 0
        %948 = vmatpush.bf16.msra.mxu0 0
        %949 = vmatpush.bf16.msra.mxu0 0
        %950 = vmatpush.bf16.msra.mxu0 0
        %951 = vmatpush.bf16.msra.mxu0 0
        %952 = vmatpush.bf16.msra.mxu0 0
        %953 = vmatpush.bf16.msra.mxu0 0
        %954 = vmatpush.bf16.msra.mxu0 %v942
        %955 = vmatpush.bf16.msra.mxu0 %v941
        %956 = vmatmul.bf16.gmra.mxu0 %v946
        %v957 = vpop.f32.mrf.mxu0
        %v958 = vadd.f32 %v932, %v957
        %v959 = vpop.f32.mrf.mxu0
        %960 = vdwg.mxu0
        %v961 = vmul.f32 %v958, 0.5
        %v962 = vmul.f32 %v958, 0.70710677
        %v963 = vmul.f32 %v962, %v962
        %v964 = vmin.f32 16.0, %v963
        %v965 = vmul.f32 %v964, 2.1237322e-06
        %v966 = vadd.f32 %v965, 0.00028619796
        %v967 = vmul.f32 %v964, %v966
        %v968 = vadd.f32 %v967, 0.0036580483
        %v969 = vmul.f32 %v964, %v968
        %v970 = vadd.f32 %v969, 0.05243302
        %v971 = vmul.f32 %v964, %v970
        %v972 = vadd.f32 %v971, 0.18741608
        %v973 = vmul.f32 %v964, %v972
        %v974 = vadd.f32 %v973, 1.1283791
        %v975 = vmul.f32 %v962, %v974
        %v976 = vmul.f32 %v964, 3.8918573e-05
        %v977 = vadd.f32 %v976, 0.001143296
        %v978 = vmul.f32 %v964, %v977
        %v979 = vadd.f32 %v978, 0.014752088
        %v980 = vmul.f32 %v964, %v979
        %v981 = vadd.f32 %v980, 0.112945676
        %v982 = vmul.f32 %v964, %v981
        %v983 = vadd.f32 %v982, 0.4994258
        %v984 = vmul.f32 %v964, %v983
        %v985 = vadd.f32 %v984, 1.0
        %v986 = vrcp.pop %v985
        %v987 = vmul.f32 %v985, %v986
        %v988 = vsub.f32 1.0, %v987
        %v989 = vmul.f32 %v986, %v988
        %v990 = vadd.f32 %v986, %v989
        %vm991 = vweird.f32 %v985
        %vm992 = vweird.f32 %v986
        %vm993 = vmor %vm991, %vm992
        %v994 = vsel %vm993, %v986, %v990
        %v995 = vand.u32 2147483647, %v985
        %vm996 = vcmp.eq.f32.partialorder %v995, 8.507059e+37
        %v997 = vand.u32 %v985, 2147483648
        %v998 = vor.u32 1.1754944e-38, %v997
        %v999 = vsel %vm996, %v998, %v994
        %v1000 = vmul.f32 %v975, %v999
        %v1001 = vmin.f32 %v1000, 1.0
        %v1002 = vmax.f32 %v1001, -1.0
        %v1003 = vadd.f32 %v1002, 1.0
        %v1004 = vmul.f32 %v961, %v1003
        %v1005 = vpack.c.bf16 %v1004, %v1004
        %v1006 = vld [vmem:[%s15] sm:$0xf]
        %v1007 = vld [vmem:[%s15 + $0x4] sm:$0xf]
        %v1008 = vld [vmem:[%s15 + $0x8] sm:$0xf]
        %v1009 = vld [vmem:[%s15 + $0xc] sm:$0xf]
        %v1010 = vld [vmem:[%s15 + $0x10] sm:$0xf]
        %v1011 = vld [vmem:[%s15 + $0x14] sm:$0xf]
        %v1012 = vld [vmem:[%s15 + $0x18] sm:$0xf]
        %v1013 = vld [vmem:[%s15 + $0x1c] sm:$0xf]
        %v1014 = vld [vmem:[%s15 + $0x20] sm:$0xf]
        %v1015 = vld [vmem:[%s15 + $0x24] sm:$0xf]
        %v1016 = vld [vmem:[%s15 + $0x28] sm:$0xf]
        %v1017 = vld [vmem:[%s15 + $0x2c] sm:$0xf]
        %v1018 = vld [vmem:[%s15 + $0x30] sm:$0xf]
        %v1019 = vld [vmem:[%s15 + $0x34] sm:$0xf]
        %v1020 = vld [vmem:[%s15 + $0x38] sm:$0xf]
        %v1021 = vld [vmem:[%s15 + $0x3c] sm:$0xf]
        %v1038 = vunpack.c.l.b16 %v1006
        %v1039 = vunpack.c.l.b16 %v1007
        %v1040 = vunpack.c.l.b16 %v1008
        %v1041 = vunpack.c.l.b16 %v1009
        %v1042 = vunpack.c.l.b16 %v1010
        %v1043 = vunpack.c.l.b16 %v1011
        %v1044 = vunpack.c.l.b16 %v1012
        %v1045 = vunpack.c.l.b16 %v1013
        %v1046 = vunpack.c.l.b16 %v1014
        %v1047 = vunpack.c.l.b16 %v1015
        %v1048 = vunpack.c.l.b16 %v1016
        %v1049 = vunpack.c.l.b16 %v1017
        %v1050 = vunpack.c.l.b16 %v1018
        %v1051 = vunpack.c.l.b16 %v1019
        %v1052 = vunpack.c.l.b16 %v1020
        %v1053 = vunpack.c.l.b16 %v1021
        %v1054 = vpack.c.b16 %v1039, %v1038
        %v1055 = vpack.c.b16 %v1041, %v1040
        %v1056 = vpack.c.b16 %v1043, %v1042
        %v1057 = vpack.c.b16 %v1045, %v1044
        %v1058 = vpack.c.b16 %v1047, %v1046
        %v1059 = vpack.c.b16 %v1049, %v1048
        %v1060 = vpack.c.b16 %v1051, %v1050
        %v1061 = vpack.c.b16 %v1053, %v1052
        %1070 = vmatpush.bf16.msra.mxu0 %v1061
        %1071 = vmatpush.bf16.msra.mxu0 %v1060
        %1072 = vmatpush.bf16.msra.mxu0 %v1059
        %1073 = vmatpush.bf16.msra.mxu0 %v1058
        %1074 = vmatpush.bf16.msra.mxu0 %v1057
        %1075 = vmatpush.bf16.msra.mxu0 %v1056
        %1076 = vmatpush.bf16.msra.mxu0 %v1055
        %1077 = vmatpush.bf16.msra.mxu0 %v1054
        %1078 = vmatmul.bf16.gmra.mxu0 %v1005
        %v1079 = vpop.f32.mrf.mxu0
        %v1080 = vadd.f32 0.0, %v1079
        %v1081 = vpop.f32.mrf.mxu0
        %1082 = vdwg.mxu0
        %v1083 = vadd.f32 %v897, %v1080
        %v1084 = vld [vmem:[%s16] sm:$0x1]
        %v1085 = vadd.f32 %v1083, %v1084
        %1086 = vst.msk [vmem:[%s619] sm:$0xff] %vm624, %v621
        %1087 = vst.msk [vmem:[%s619] sm:$0x1] %vm900, %v1085
        %s1088 = sand.u32 %s448, 1
        %s1089 = scalar_lea.sflag [#allocation4], %s1088
        %s1090 = sand.u32 %s448, 1
        %s1091 = smul.addr %s1090, 8
        %s1092 = scalar_lea.vmem [#allocation5], %s1091
        // Predicated region
        $region101: #{tpu_custom_call.1} parent=95 // pred_check
          %p1093 = pneg %p458
        $region102: #{tpu_custom_call.1} parent=95 // pred_check_branch
          %1095 = sbr.rel (%p1093) target = $region104
        $region103: #{tpu_custom_call.1} parent=95 // pred_region
          %1097 = vsyncadd %s1089, 0
          %s1098 = smul.addr %s36, 8
          %s1099 = scalar_lea.hbm %s19, %s1098
          %s1101 = sshll.u32 %s1092, 4
          %s1102 = int_to_ptr.vmem [resolvable:$true] %s1101
          %s1103 = sshll.u32 %s1099, 4
          %s1104 = int_to_ptr.hbm [resolvable:$true] %s1103
          %1106 = dma.vmem_to_hbm [thread:$0]  %s1102, 128, %s1104, %s1089
        $region104: #{tpu_custom_call.1} parent=95 // pred_fallthru
          _
      $region96: #{tpu_custom_call.1} parent=5 // pred_fallthru
        _
      %p1107 = scmp.le.s32.totalorder 2, %s31
      // Predicated region
      $region105: #{tpu_custom_call.1} parent=5 // pred_check
        %p1108 = pneg %p1107
      $region106: #{tpu_custom_call.1} parent=5 // pred_check_branch
        %1110 = sbr.rel (%p1108) target = $region108
      $region107: #{tpu_custom_call.1} parent=5 // pred_region
        %s1111 = ssub.s32 %s31, 2
        // Predicated region
        $region109: #{tpu_custom_call.1} parent=107 // pred_check
          %p1112 = pneg %p464
        $region110: #{tpu_custom_call.1} parent=107 // pred_check_branch
          %1114 = sbr.rel (%p1112) target = $region112
        $region111: #{tpu_custom_call.1} parent=107 // pred_region
          %s1115 = sand.u32 %s449, 1
          %s1116 = scalar_lea.sflag [#allocation4], %s1115
          %s1117 = sand.u32 %s449, 1
          %s1118 = smul.addr %s1117, 8
          %s1119 = scalar_lea.vmem [#allocation5], %s1118
          %1121 = dma.done %s1116, 128
        $region112: #{tpu_custom_call.1} parent=107 // pred_fallthru
          _
      $region108: #{tpu_custom_call.1} parent=5 // pred_fallthru
        _
    $region6: #{tpu_custom_call.1} parent=1 // loop_footer
      %s35 = sadd.s32 1, %s31
    $region7: #{tpu_custom_call.1} parent=1 // loop_footer_branch
      %30 = sbr.rel target = $region3
    $region8: #{tpu_custom_call.1} parent=1 // loop_exit
      _
    %1122 = vsyncpa [#allocation3], 1
    %s1123 = scalar_lea.sflag [#allocation3], 1
    %1124 = vsyncpa %s1123, 1
    %1125 = vsyncpa [#allocation4], 1
    %s1126 = scalar_lea.sflag [#allocation4], 1
    %1127 = vsyncpa %s1126, 1

// kernel: tpu_custom_call.1
$region0: #{tpu_custom_call.1}
  #allocation0 [shape = 'u32[]', space=smem, size = 0x4, offset = 0x4, fixed_abs, tag = 'smem constant byte address 0x4 - core index']
  #allocation1 [shape = 'u32[72,128]{1,0:T(1,128)}', space=vmem, size = 0x9000, scoped, tag = 'internal scratch']
  %s0 = inlined_call_operand.hbm [shape: f32[4,8,32], index: 0, kind: input, shape index: {}, may-alias: {0,19}]
  %s1 = inlined_call_operand.vmem [shape: f32[1,32], index: 1, kind: input, shape index: {}]
  %s2 = inlined_call_operand.vmem [shape: f32[1,32], index: 2, kind: input, shape index: {}]
  %s3 = inlined_call_operand.vmem [shape: f32[1,32], index: 3, kind: input, shape index: {}]
  %s4 = inlined_call_operand.vmem [shape: f32[1,32], index: 4, kind: input, shape index: {}]
  %s5 = inlined_call_operand.vmem [shape: bf16[32,32], index: 5, kind: input, shape index: {}]
  %s6 = inlined_call_operand.vmem [shape: f32[1,32], index: 6, kind: input, shape index: {}]
  %s7 = inlined_call_operand.vmem [shape: bf16[32,32], index: 7, kind: input, shape index: {}]
  %s8 = inlined_call_operand.vmem [shape: f32[1,32], index: 8, kind: input, shape index: {}]
  %s9 = inlined_call_operand.vmem [shape: bf16[32,32], index: 9, kind: input, shape index: {}]
  %s10 = inlined_call_operand.vmem [shape: f32[1,32], index: 10, kind: input, shape index: {}]
  %s11 = inlined_call_operand.vmem [shape: bf16[32,32], index: 11, kind: input, shape index: {}]
  %s12 = inlined_call_operand.vmem [shape: f32[1,32], index: 12, kind: input, shape index: {}]
  %s13 = inlined_call_operand.vmem [shape: bf16[32,128], index: 13, kind: input, shape index: {}]
  %s14 = inlined_call_operand.vmem [shape: f32[1,128], index: 14, kind: input, shape index: {}]
  %s15 = inlined_call_operand.vmem [shape: bf16[128,32], index: 15, kind: input, shape index: {}]
  %s16 = inlined_call_operand.vmem [shape: f32[1,32], index: 16, kind: input, shape index: {}]
  %s17 = inlined_call_operand.vmem [shape: bf16[32,4], index: 17, kind: input, shape index: {}]
  %s18 = inlined_call_operand.vmem [shape: bf16[4,32], index: 18, kind: input, shape index: {}]
  %s19 = inlined_call_operand.hbm [shape: f32[4,8,32], index: 19, kind: output, shape index: {}, may-alias: {0,19}]
  %s20 = sld [smem:[#allocation0]]
  $region113: #{tpu_custom_call.1} parent=0
    _
  %s22 = ssub.s32 1, %s20
  %s23 = scalar_select 0, %s22, %s20
  $region1: #{tpu_custom_call.1} parent=0
    #allocation2 [shape = 'u8[8192]{0}', space=vmem, size = 0x2000, scoped, tag = 'input window, operand 0']
    #allocation3 [shape = 's32[2]{0}', space=sflag, size = 0x8, scoped, tag = 'scoped memory for tpu_custom_call.1']
    #allocation4 [shape = 's32[2]{0}', space=sflag, size = 0x8, scoped, tag = 'scoped memory for tpu_custom_call.1']
    #allocation5 [shape = 'u8[8192]{0}', space=vmem, size = 0x2000, scoped, tag = 'output window, operand 0']
    %24 = vsyncpa [#allocation3], 0
    %s25 = scalar_lea.sflag [#allocation3], 1
    %26 = vsyncpa %s25, 0
    %27 = vsyncpa [#allocation4], 0
    %s28 = scalar_lea.sflag [#allocation4], 1
    %29 = vsyncpa %s28, 0
    loop: start=0, step=1, limit=6
    $region2: #{tpu_custom_call.1} parent=1 // loop_pre_header
      _
    $region3: #{tpu_custom_call.1} parent=1 // loop_header
      %s31 = sphi 0, %s35
      %p32 = scmp.ge.s32.totalorder %s31, 6
      %s41 = sphi 0, %s43
      %s44 = sphi 0, %s41
      %s45 = sphi 0, %s44
      %s61 = sphi 0, %s45
      %s65 = sphi 0, %s65
      %s67 = sphi 0, %s65
      %s68 = sphi 0, %s67
      %s82 = sphi 0, %s68
      %s86 = sphi 0, %s86
      %s88 = sphi 0, %s86
      %s89 = sphi 0, %s88
      %s103 = sphi 0, %s89
      %s107 = sphi 0, %s107
      %s109 = sphi 0, %s107
      %s110 = sphi 0, %s109
      %s124 = sphi 0, %s110
      %s128 = sphi 0, %s128
      %s130 = sphi 0, %s128
      %s131 = sphi 0, %s130
      %s145 = sphi 0, %s131
      %s149 = sphi 0, %s149
      %s151 = sphi 0, %s149
      %s152 = sphi 0, %s151
      %s166 = sphi 0, %s152
      %s170 = sphi 0, %s170
      %s172 = sphi 0, %s170
      %s173 = sphi 0, %s172
      %s187 = sphi 0, %s173
      %s191 = sphi 0, %s191
      %s193 = sphi 0, %s191
      %s194 = sphi 0, %s193
      %s208 = sphi 0, %s194
      %s212 = sphi 0, %s212
      %s214 = sphi 0, %s212
      %s215 = sphi 0, %s214
      %s229 = sphi 0, %s215
      %s233 = sphi 0, %s233
      %s235 = sphi 0, %s233
      %s236 = sphi 0, %s235
      %s250 = sphi 0, %s236
      %s254 = sphi 0, %s254
      %s256 = sphi 0, %s254
      %s257 = sphi 0, %s256
      %s271 = sphi 0, %s257
      %s275 = sphi 0, %s275
      %s277 = sphi 0, %s275
      %s278 = sphi 0, %s277
      %s292 = sphi 0, %s278
      %s296 = sphi 0, %s296
      %s298 = sphi 0, %s296
      %s299 = sphi 0, %s298
      %s313 = sphi 0, %s299
      %s317 = sphi 0, %s317
      %s319 = sphi 0, %s317
      %s320 = sphi 0, %s319
      %s334 = sphi 0, %s320
      %s338 = sphi 0, %s338
      %s340 = sphi 0, %s338
      %s341 = sphi 0, %s340
      %s355 = sphi 0, %s341
      %s359 = sphi 0, %s359
      %s361 = sphi 0, %s359
      %s362 = sphi 0, %s361
      %s376 = sphi 0, %s362
      %s380 = sphi 0, %s380
      %s382 = sphi 0, %s380
      %s383 = sphi 0, %s382
      %s397 = sphi 0, %s383
      %s401 = sphi 0, %s401
      %s403 = sphi 0, %s401
      %s404 = sphi 0, %s403
      %s418 = sphi 0, %s404
      %s422 = sphi 0, %s422
      %s424 = sphi 0, %s422
      %s425 = sphi 0, %s424
      %s439 = sphi 0, %s425
      %s445 = sphi 0, %s447
      %s448 = sphi 0, %s445
      %s449 = sphi 0, %s448
      %s465 = sphi 0, %s449
    $region4: #{tpu_custom_call.1} parent=1 // loop_header_branch
      %34 = sbr.rel (%p32) target = $region8
    $region5: #{tpu_custom_call.1} parent=1 // loop_body
      %s36 = ssub.s32 %s31, 1
      %s37 = ssub.s32 %s31, 2
      %s38 = sadd.s32 %s31, 1
      %s39 = ssub.s32 %s31, %s38
      %p40 = scmp.eq.s32.totalorder %s39, 0
      %s42 = sadd.s32 %s41, 1
      %s43 = scalar_select %p40, %s41, %s42
      %p46 = pneg %p40
      %p47 = scmp.eq.s32.totalorder %s31, 3
      %p48 = por %p46, %p47
      %p49 = scmp.ne.s32.totalorder %s41, %s44
      %p50 = scmp.eq.s32.totalorder %s31, 0
      %p51 = por %p49, %p50
      %p52 = scmp.ne.s32.totalorder %s41, %s44
      %p53 = scmp.eq.s32.totalorder %s36, 3
      %p54 = por %p52, %p53
      %p55 = scmp.ne.s32.totalorder %s44, %s45
      %p56 = scmp.eq.s32.totalorder %s36, 0
      %p57 = por %p55, %p56
      %p58 = scmp.ne.s32.totalorder %s44, %s45
      %p59 = scmp.eq.s32.totalorder %s37, 3
      %p60 = por %p58, %p59
      %p62 = scmp.ne.s32.totalorder %s45, %s61
      %p63 = scmp.eq.s32.totalorder %s37, 0
      %p64 = por %p62, %p63
      %s66 = sadd.s32 %s65, 1
      %p69 = scmp.eq.s32.totalorder %s31, 3
      %p70 = scmp.ne.s32.totalorder %s65, %s67
      %p71 = scmp.eq.s32.totalorder %s31, 0
      %p72 = por %p70, %p71
      %p73 = scmp.ne.s32.totalorder %s65, %s67
      %p74 = scmp.eq.s32.totalorder %s36, 3
      %p75 = por %p73, %p74
      %p76 = scmp.ne.s32.totalorder %s67, %s68
      %p77 = scmp.eq.s32.totalorder %s36, 0
      %p78 = por %p76, %p77
      %p79 = scmp.ne.s32.totalorder %s67, %s68
      %p80 = scmp.eq.s32.totalorder %s37, 3
      %p81 = por %p79, %p80
      %p83 = scmp.ne.s32.totalorder %s68, %s82
      %p84 = scmp.eq.s32.totalorder %s37, 0
      %p85 = por %p83, %p84
      %s87 = sadd.s32 %s86, 1
      %p90 = scmp.eq.s32.totalorder %s31, 3
      %p91 = scmp.ne.s32.totalorder %s86, %s88
      %p92 = scmp.eq.s32.totalorder %s31, 0
      %p93 = por %p91, %p92
      %p94 = scmp.ne.s32.totalorder %s86, %s88
      %p95 = scmp.eq.s32.totalorder %s36, 3
      %p96 = por %p94, %p95
      %p97 = scmp.ne.s32.totalorder %s88, %s89
      %p98 = scmp.eq.s32.totalorder %s36, 0
      %p99 = por %p97, %p98
      %p100 = scmp.ne.s32.totalorder %s88, %s89
      %p101 = scmp.eq.s32.totalorder %s37, 3
      %p102 = por %p100, %p101
      %p104 = scmp.ne.s32.totalorder %s89, %s103
      %p105 = scmp.eq.s32.totalorder %s37, 0
      %p106 = por %p104, %p105
      %s108 = sadd.s32 %s107, 1
      %p111 = scmp.eq.s32.totalorder %s31, 3
      %p112 = scmp.ne.s32.totalorder %s107, %s109
      %p113 = scmp.eq.s32.totalorder %s31, 0
      %p114 = por %p112, %p113
      %p115 = scmp.ne.s32.totalorder %s107, %s109
      %p116 = scmp.eq.s32.totalorder %s36, 3
      %p117 = por %p115, %p116
      %p118 = scmp.ne.s32.totalorder %s109, %s110
      %p119 = scmp.eq.s32.totalorder %s36, 0
      %p120 = por %p118, %p119
      %p121 = scmp.ne.s32.totalorder %s109, %s110
      %p122 = scmp.eq.s32.totalorder %s37, 3
      %p123 = por %p121, %p122
      %p125 = scmp.ne.s32.totalorder %s110, %s124
      %p126 = scmp.eq.s32.totalorder %s37, 0
      %p127 = por %p125, %p126
      %s129 = sadd.s32 %s128, 1
      %p132 = scmp.eq.s32.totalorder %s31, 3
      %p133 = scmp.ne.s32.totalorder %s128, %s130
      %p134 = scmp.eq.s32.totalorder %s31, 0
      %p135 = por %p133, %p134
      %p136 = scmp.ne.s32.totalorder %s128, %s130
      %p137 = scmp.eq.s32.totalorder %s36, 3
      %p138 = por %p136, %p137
      %p139 = scmp.ne.s32.totalorder %s130, %s131
      %p140 = scmp.eq.s32.totalorder %s36, 0
      %p141 = por %p139, %p140
      %p142 = scmp.ne.s32.totalorder %s130, %s131
      %p143 = scmp.eq.s32.totalorder %s37, 3
      %p144 = por %p142, %p143
      %p146 = scmp.ne.s32.totalorder %s131, %s145
      %p147 = scmp.eq.s32.totalorder %s37, 0
      %p148 = por %p146, %p147
      %s150 = sadd.s32 %s149, 1
      %p153 = scmp.eq.s32.totalorder %s31, 3
      %p154 = scmp.ne.s32.totalorder %s149, %s151
      %p155 = scmp.eq.s32.totalorder %s31, 0
      %p156 = por %p154, %p155
      %p157 = scmp.ne.s32.totalorder %s149, %s151
      %p158 = scmp.eq.s32.totalorder %s36, 3
      %p159 = por %p157, %p158
      %p160 = scmp.ne.s32.totalorder %s151, %s152
      %p161 = scmp.eq.s32.totalorder %s36, 0
      %p162 = por %p160, %p161
      %p163 = scmp.ne.s32.totalorder %s151, %s152
      %p164 = scmp.eq.s32.totalorder %s37, 3
      %p165 = por %p163, %p164
      %p167 = scmp.ne.s32.totalorder %s152, %s166
      %p168 = scmp.eq.s32.totalorder %s37, 0
      %p169 = por %p167, %p168
      %s171 = sadd.s32 %s170, 1
      %p174 = scmp.eq.s32.totalorder %s31, 3
      %p175 = scmp.ne.s32.totalorder %s170, %s172
      %p176 = scmp.eq.s32.totalorder %s31, 0
      %p177 = por %p175, %p176
      %p178 = scmp.ne.s32.totalorder %s170, %s172
      %p179 = scmp.eq.s32.totalorder %s36, 3
      %p180 = por %p178, %p179
      %p181 = scmp.ne.s32.totalorder %s172, %s173
      %p182 = scmp.eq.s32.totalorder %s36, 0
      %p183 = por %p181, %p182
      %p184 = scmp.ne.s32.totalorder %s172, %s173
      %p185 = scmp.eq.s32.totalorder %s37, 3
      %p186 = por %p184, %p185
      %p188 = scmp.ne.s32.totalorder %s173, %s187
      %p189 = scmp.eq.s32.totalorder %s37, 0
      %p190 = por %p188, %p189
      %s192 = sadd.s32 %s191, 1
      %p195 = scmp.eq.s32.totalorder %s31, 3
      %p196 = scmp.ne.s32.totalorder %s191, %s193
      %p197 = scmp.eq.s32.totalorder %s31, 0
      %p198 = por %p196, %p197
      %p199 = scmp.ne.s32.totalorder %s191, %s193
      %p200 = scmp.eq.s32.totalorder %s36, 3
      %p201 = por %p199, %p200
      %p202 = scmp.ne.s32.totalorder %s193, %s194
      %p203 = scmp.eq.s32.totalorder %s36, 0
      %p204 = por %p202, %p203
      %p205 = scmp.ne.s32.totalorder %s193, %s194
      %p206 = scmp.eq.s32.totalorder %s37, 3
      %p207 = por %p205, %p206
      %p209 = scmp.ne.s32.totalorder %s194, %s208
      %p210 = scmp.eq.s32.totalorder %s37, 0
      %p211 = por %p209, %p210
      %s213 = sadd.s32 %s212, 1
      %p216 = scmp.eq.s32.totalorder %s31, 3
      %p217 = scmp.ne.s32.totalorder %s212, %s214
      %p218 = scmp.eq.s32.totalorder %s31, 0
      %p219 = por %p217, %p218
      %p220 = scmp.ne.s32.totalorder %s212, %s214
      %p221 = scmp.eq.s32.totalorder %s36, 3
      %p222 = por %p220, %p221
      %p223 = scmp.ne.s32.totalorder %s214, %s215
      %p224 = scmp.eq.s32.totalorder %s36, 0
      %p225 = por %p223, %p224
      %p226 = scmp.ne.s32.totalorder %s214, %s215
      %p227 = scmp.eq.s32.totalorder %s37, 3
      %p228 = por %p226, %p227
      %p230 = scmp.ne.s32.totalorder %s215, %s229
      %p231 = scmp.eq.s32.totalorder %s37, 0
      %p232 = por %p230, %p231
      %s234 = sadd.s32 %s233, 1
      %p237 = scmp.eq.s32.totalorder %s31, 3
      %p238 = scmp.ne.s32.totalorder %s233, %s235
      %p239 = scmp.eq.s32.totalorder %s31, 0
      %p240 = por %p238, %p239
      %p241 = scmp.ne.s32.totalorder %s233, %s235
      %p242 = scmp.eq.s32.totalorder %s36, 3
      %p243 = por %p241, %p242
      %p244 = scmp.ne.s32.totalorder %s235, %s236
      %p245 = scmp.eq.s32.totalorder %s36, 0
      %p246 = por %p244, %p245
      %p247 = scmp.ne.s32.totalorder %s235, %s236
      %p248 = scmp.eq.s32.totalorder %s37, 3
      %p249 = por %p247, %p248
      %p251 = scmp.ne.s32.totalorder %s236, %s250
      %p252 = scmp.eq.s32.totalorder %s37, 0
      %p253 = por %p251, %p252
      %s255 = sadd.s32 %s254, 1
      %p258 = scmp.eq.s32.totalorder %s31, 3
      %p259 = scmp.ne.s32.totalorder %s254, %s256
      %p260 = scmp.eq.s32.totalorder %s31, 0
      %p261 = por %p259, %p260
      %p262 = scmp.ne.s32.totalorder %s254, %s256
      %p263 = scmp.eq.s32.totalorder %s36, 3
      %p264 = por %p262, %p263
      %p265 = scmp.ne.s32.totalorder %s256, %s257
      %p266 = scmp.eq.s32.totalorder %s36, 0
      %p267 = por %p265, %p266
      %p268 = scmp.ne.s32.totalorder %s256, %s257
      %p269 = scmp.eq.s32.totalorder %s37, 3
      %p270 = por %p268, %p269
      %p272 = scmp.ne.s32.totalorder %s257, %s271
      %p273 = scmp.eq.s32.totalorder %s37, 0
      %p274 = por %p272, %p273
      %s276 = sadd.s32 %s275, 1
      %p279 = scmp.eq.s32.totalorder %s31, 3
      %p280 = scmp.ne.s32.totalorder %s275, %s277
      %p281 = scmp.eq.s32.totalorder %s31, 0
      %p282 = por %p280, %p281
      %p283 = scmp.ne.s32.totalorder %s275, %s277
      %p284 = scmp.eq.s32.totalorder %s36, 3
      %p285 = por %p283, %p284
      %p286 = scmp.ne.s32.totalorder %s277, %s278
      %p287 = scmp.eq.s32.totalorder %s36, 0
      %p288 = por %p286, %p287
      %p289 = scmp.ne.s32.totalorder %s277, %s278
      %p290 = scmp.eq.s32.totalorder %s37, 3
      %p291 = por %p289, %p290
      %p293 = scmp.ne.s32.totalorder %s278, %s292
      %p294 = scmp.eq.s32.totalorder %s37, 0
      %p295 = por %p293, %p294
      %s297 = sadd.s32 %s296, 1
      %p300 = scmp.eq.s32.totalorder %s31, 3
      %p301 = scmp.ne.s32.totalorder %s296, %s298
      %p302 = scmp.eq.s32.totalorder %s31, 0
      %p303 = por %p301, %p302
      %p304 = scmp.ne.s32.totalorder %s296, %s298
      %p305 = scmp.eq.s32.totalorder %s36, 3
      %p306 = por %p304, %p305
      %p307 = scmp.ne.s32.totalorder %s298, %s299
      %p308 = scmp.eq.s32.totalorder %s36, 0
      %p309 = por %p307, %p308
      %p310 = scmp.ne.s32.totalorder %s298, %s299
      %p311 = scmp.eq.s32.totalorder %s37, 3
      %p312 = por %p310, %p311
      %p314 = scmp.ne.s32.totalorder %s299, %s313
      %p315 = scmp.eq.s32.totalorder %s37, 0
      %p316 = por %p314, %p315
      %s318 = sadd.s32 %s317, 1
      %p321 = scmp.eq.s32.totalorder %s31, 3
      %p322 = scmp.ne.s32.totalorder %s317, %s319
      %p323 = scmp.eq.s32.totalorder %s31, 0
      %p324 = por %p322, %p323
      %p325 = scmp.ne.s32.totalorder %s317, %s319
      %p326 = scmp.eq.s32.totalorder %s36, 3
      %p327 = por %p325, %p326
      %p328 = scmp.ne.s32.totalorder %s319, %s320
      %p329 = scmp.eq.s32.totalorder %s36, 0
      %p330 = por %p328, %p329
      %p331 = scmp.ne.s32.totalorder %s319, %s320
      %p332 = scmp.eq.s32.totalorder %s37, 3
      %p333 = por %p331, %p332
      %p335 = scmp.ne.s32.totalorder %s320, %s334
      %p336 = scmp.eq.s32.totalorder %s37, 0
      %p337 = por %p335, %p336
      %s339 = sadd.s32 %s338, 1
      %p342 = scmp.eq.s32.totalorder %s31, 3
      %p343 = scmp.ne.s32.totalorder %s338, %s340
      %p344 = scmp.eq.s32.totalorder %s31, 0
      %p345 = por %p343, %p344
      %p346 = scmp.ne.s32.totalorder %s338, %s340
      %p347 = scmp.eq.s32.totalorder %s36, 3
      %p348 = por %p346, %p347
      %p349 = scmp.ne.s32.totalorder %s340, %s341
      %p350 = scmp.eq.s32.totalorder %s36, 0
      %p351 = por %p349, %p350
      %p352 = scmp.ne.s32.totalorder %s340, %s341
      %p353 = scmp.eq.s32.totalorder %s37, 3
      %p354 = por %p352, %p353
      %p356 = scmp.ne.s32.totalorder %s341, %s355
      %p357 = scmp.eq.s32.totalorder %s37, 0
      %p358 = por %p356, %p357
      %s360 = sadd.s32 %s359, 1
      %p363 = scmp.eq.s32.totalorder %s31, 3
      %p364 = scmp.ne.s32.totalorder %s359, %s361
      %p365 = scmp.eq.s32.totalorder %s31, 0
      %p366 = por %p364, %p365
      %p367 = scmp.ne.s32.totalorder %s359, %s361
      %p368 = scmp.eq.s32.totalorder %s36, 3
      %p369 = por %p367, %p368
      %p370 = scmp.ne.s32.totalorder %s361, %s362
      %p371 = scmp.eq.s32.totalorder %s36, 0
      %p372 = por %p370, %p371
      %p373 = scmp.ne.s32.totalorder %s361, %s362
      %p374 = scmp.eq.s32.totalorder %s37, 3
      %p375 = por %p373, %p374
      %p377 = scmp.ne.s32.totalorder %s362, %s376
      %p378 = scmp.eq.s32.totalorder %s37, 0
      %p379 = por %p377, %p378
      %s381 = sadd.s32 %s380, 1
      %p384 = scmp.eq.s32.totalorder %s31, 3
      %p385 = scmp.ne.s32.totalorder %s380, %s382
      %p386 = scmp.eq.s32.totalorder %s31, 0
      %p387 = por %p385, %p386
      %p388 = scmp.ne.s32.totalorder %s380, %s382
      %p389 = scmp.eq.s32.totalorder %s36, 3
      %p390 = por %p388, %p389
      %p391 = scmp.ne.s32.totalorder %s382, %s383
      %p392 = scmp.eq.s32.totalorder %s36, 0
      %p393 = por %p391, %p392
      %p394 = scmp.ne.s32.totalorder %s382, %s383
      %p395 = scmp.eq.s32.totalorder %s37, 3
      %p396 = por %p394, %p395
      %p398 = scmp.ne.s32.totalorder %s383, %s397
      %p399 = scmp.eq.s32.totalorder %s37, 0
      %p400 = por %p398, %p399
      %s402 = sadd.s32 %s401, 1
      %p405 = scmp.eq.s32.totalorder %s31, 3
      %p406 = scmp.ne.s32.totalorder %s401, %s403
      %p407 = scmp.eq.s32.totalorder %s31, 0
      %p408 = por %p406, %p407
      %p409 = scmp.ne.s32.totalorder %s401, %s403
      %p410 = scmp.eq.s32.totalorder %s36, 3
      %p411 = por %p409, %p410
      %p412 = scmp.ne.s32.totalorder %s403, %s404
      %p413 = scmp.eq.s32.totalorder %s36, 0
      %p414 = por %p412, %p413
      %p415 = scmp.ne.s32.totalorder %s403, %s404
      %p416 = scmp.eq.s32.totalorder %s37, 3
      %p417 = por %p415, %p416
      %p419 = scmp.ne.s32.totalorder %s404, %s418
      %p420 = scmp.eq.s32.totalorder %s37, 0
      %p421 = por %p419, %p420
      %s423 = sadd.s32 %s422, 1
      %p426 = scmp.eq.s32.totalorder %s31, 3
      %p427 = scmp.ne.s32.totalorder %s422, %s424
      %p428 = scmp.eq.s32.totalorder %s31, 0
      %p429 = por %p427, %p428
      %p430 = scmp.ne.s32.totalorder %s422, %s424
      %p431 = scmp.eq.s32.totalorder %s36, 3
      %p432 = por %p430, %p431
      %p433 = scmp.ne.s32.totalorder %s424, %s425
      %p434 = scmp.eq.s32.totalorder %s36, 0
      %p435 = por %p433, %p434
      %p436 = scmp.ne.s32.totalorder %s424, %s425
      %p437 = scmp.eq.s32.totalorder %s37, 3
      %p438 = por %p436, %p437
      %p440 = scmp.ne.s32.totalorder %s425, %s439
      %p441 = scmp.eq.s32.totalorder %s37, 0
      %p442 = por %p440, %p441
      %s443 = ssub.s32 %s31, %s38
      %p444 = scmp.eq.s32.totalorder %s443, 0
      %s446 = sadd.s32 %s445, 1
      %s447 = scalar_select %p444, %s445, %s446
      %p450 = pneg %p444
      %p451 = scmp.eq.s32.totalorder %s31, 3
      %p452 = por %p450, %p451
      %p453 = scmp.ne.s32.totalorder %s445, %s448
      %p454 = scmp.eq.s32.totalorder %s31, 0
      %p455 = por %p453, %p454
      %p456 = scmp.ne.s32.totalorder %s445, %s448
      %p457 = scmp.eq.s32.totalorder %s36, 3
      %p458 = por %p456, %p457
      %p459 = scmp.ne.s32.totalorder %s448, %s449
      %p460 = scmp.eq.s32.totalorder %s36, 0
      %p461 = por %p459, %p460
      %p462 = scmp.ne.s32.totalorder %s448, %s449
      %p463 = scmp.eq.s32.totalorder %s37, 3
      %p464 = por %p462, %p463
      %p466 = scmp.ne.s32.totalorder %s449, %s465
      %p467 = scmp.eq.s32.totalorder %s37, 0
      %p468 = por %p466, %p467
      %p469 = scmp.le.s32.totalorder 1, %s31
      %p470 = scmp.lt.s32.totalorder %s31, 5
      %p471 = pnand %p469, %p470
      %p472 = pneg %p471
      // Predicated region
      $region9: #{tpu_custom_call.1} parent=5 // pred_check
        _
      $region10: #{tpu_custom_call.1} parent=5 // pred_check_branch
        %474 = sbr.rel (%p471) target = $region12
      $region11: #{tpu_custom_call.1} parent=5 // pred_region
        %s475 = ssub.s32 %s31, 1
        // Predicated region
        $region13: #{tpu_custom_call.1} parent=11 // pred_check
          %p476 = pneg %p78
        $region14: #{tpu_custom_call.1} parent=11 // pred_check_branch
          %478 = sbr.rel (%p476) target = $region16
        $region15: #{tpu_custom_call.1} parent=11 // pred_region
          _
        $region16: #{tpu_custom_call.1} parent=11 // pred_fallthru
          _
        // Predicated region
        $region17: #{tpu_custom_call.1} parent=11 // pred_check
          %p479 = pneg %p99
        $region18: #{tpu_custom_call.1} parent=11 // pred_check_branch
          %481 = sbr.rel (%p479) target = $region20
        $region19: #{tpu_custom_call.1} parent=11 // pred_region
          _
        $region20: #{tpu_custom_call.1} parent=11 // pred_fallthru
          _
        // Predicated region
        $region21: #{tpu_custom_call.1} parent=11 // pred_check
          %p482 = pneg %p120
        $region22: #{tpu_custom_call.1} parent=11 // pred_check_branch
          %484 = sbr.rel (%p482) target = $region24
        $region23: #{tpu_custom_call.1} parent=11 // pred_region
          _
        $region24: #{tpu_custom_call.1} parent=11 // pred_fallthru
          _
        // Predicated region
        $region25: #{tpu_custom_call.1} parent=11 // pred_check
          %p485 = pneg %p141
        $region26: #{tpu_custom_call.1} parent=11 // pred_check_branch
          %487 = sbr.rel (%p485) target = $region28
        $region27: #{tpu_custom_call.1} parent=11 // pred_region
          _
        $region28: #{tpu_custom_call.1} parent=11 // pred_fallthru
          _
        // Predicated region
        $region29: #{tpu_custom_call.1} parent=11 // pred_check
          %p488 = pneg %p162
        $region30: #{tpu_custom_call.1} parent=11 // pred_check_branch
          %490 = sbr.rel (%p488) target = $region32
        $region31: #{tpu_custom_call.1} parent=11 // pred_region
          _
        $region32: #{tpu_custom_call.1} parent=11 // pred_fallthru
          _
        // Predicated region
        $region33: #{tpu_custom_call.1} parent=11 // pred_check
          %p491 = pneg %p183
        $region34: #{tpu_custom_call.1} parent=11 // pred_check_branch
          %493 = sbr.rel (%p491) target = $region36
        $region35: #{tpu_custom_call.1} parent=11 // pred_region
          _
        $region36: #{tpu_custom_call.1} parent=11 // pred_fallthru
          _
        // Predicated region
        $region37: #{tpu_custom_call.1} parent=11 // pred_check
          %p494 = pneg %p204
        $region38: #{tpu_custom_call.1} parent=11 // pred_check_branch
          %496 = sbr.rel (%p494) target = $region40
        $region39: #{tpu_custom_call.1} parent=11 // pred_region
          _
        $region40: #{tpu_custom_call.1} parent=11 // pred_fallthru
          _
        // Predicated region
        $region41: #{tpu_custom_call.1} parent=11 // pred_check
          %p497 = pneg %p225
        $region42: #{tpu_custom_call.1} parent=11 // pred_check_branch
          %499 = sbr.rel (%p497) target = $region44
        $region43: #{tpu_custom_call.1} parent=11 // pred_region
          _
        $region44: #{tpu_custom_call.1} parent=11 // pred_fallthru
          _
        // Predicated region
        $region45: #{tpu_custom_call.1} parent=11 // pred_check
          %p500 = pneg %p246
        $region46: #{tpu_custom_call.1} parent=11 // pred_check_branch
          %502 = sbr.rel (%p500) target = $region48
        $region47: #{tpu_custom_call.1} parent=11 // pred_region
          _
        $region48: #{tpu_custom_call.1} parent=11 // pred_fallthru
          _
        // Predicated region
        $region49: #{tpu_custom_call.1} parent=11 // pred_check
          %p503 = pneg %p267
        $region50: #{tpu_custom_call.1} parent=11 // pred_check_branch
          %505 = sbr.rel (%p503) target = $region52
        $region51: #{tpu_custom_call.1} parent=11 // pred_region
          _
        $region52: #{tpu_custom_call.1} parent=11 // pred_fallthru
          _
        // Predicated region
        $region53: #{tpu_custom_call.1} parent=11 // pred_check
          %p506 = pneg %p288
        $region54: #{tpu_custom_call.1} parent=11 // pred_check_branch
          %508 = sbr.rel (%p506) target = $region56
        $region55: #{tpu_custom_call.1} parent=11 // pred_region
          _
        $region56: #{tpu_custom_call.1} parent=11 // pred_fallthru
          _
        // Predicated region
        $region57: #{tpu_custom_call.1} parent=11 // pred_check
          %p509 = pneg %p309
        $region58: #{tpu_custom_call.1} parent=11 // pred_check_branch
          %511 = sbr.rel (%p509) target = $region60
        $region59: #{tpu_custom_call.1} parent=11 // pred_region
          _
        $region60: #{tpu_custom_call.1} parent=11 // pred_fallthru
          _
        // Predicated region
        $region61: #{tpu_custom_call.1} parent=11 // pred_check
          %p512 = pneg %p330
        $region62: #{tpu_custom_call.1} parent=11 // pred_check_branch
          %514 = sbr.rel (%p512) target = $region64
        $region63: #{tpu_custom_call.1} parent=11 // pred_region
          _
        $region64: #{tpu_custom_call.1} parent=11 // pred_fallthru
          _
        // Predicated region
        $region65: #{tpu_custom_call.1} parent=11 // pred_check
          %p515 = pneg %p351
        $region66: #{tpu_custom_call.1} parent=11 // pred_check_branch
          %517 = sbr.rel (%p515) target = $region68
        $region67: #{tpu_custom_call.1} parent=11 // pred_region
          _
        $region68: #{tpu_custom_call.1} parent=11 // pred_fallthru
          _
        // Predicated region
        $region69: #{tpu_custom_call.1} parent=11 // pred_check
          %p518 = pneg %p372
        $region70: #{tpu_custom_call.1} parent=11 // pred_check_branch
          %520 = sbr.rel (%p518) target = $region72
        $region71: #{tpu_custom_call.1} parent=11 // pred_region
          _
        $region72: #{tpu_custom_call.1} parent=11 // pred_fallthru
          _
        // Predicated region
        $region73: #{tpu_custom_call.1} parent=11 // pred_check
          %p521 = pneg %p393
        $region74: #{tpu_custom_call.1} parent=11 // pred_check_branch
          %523 = sbr.rel (%p521) target = $region76
        $region75: #{tpu_custom_call.1} parent=11 // pred_region
          _
        $region76: #{tpu_custom_call.1} parent=11 // pred_fallthru
          _
        // Predicated region
        $region77: #{tpu_custom_call.1} parent=11 // pred_check
          %p524 = pneg %p414
        $region78: #{tpu_custom_call.1} parent=11 // pred_check_branch
          %526 = sbr.rel (%p524) target = $region80
        $region79: #{tpu_custom_call.1} parent=11 // pred_region
          _
        $region80: #{tpu_custom_call.1} parent=11 // pred_fallthru
          _
        // Predicated region
        $region81: #{tpu_custom_call.1} parent=11 // pred_check
          %p527 = pneg %p435
        $region82: #{tpu_custom_call.1} parent=11 // pred_check_branch
          %529 = sbr.rel (%p527) target = $region84
        $region83: #{tpu_custom_call.1} parent=11 // pred_region
          _
        $region84: #{tpu_custom_call.1} parent=11 // pred_fallthru
          _
      $region12: #{tpu_custom_call.1} parent=5 // pred_fallthru
        _
      %p530 = scmp.lt.s32.totalorder %s31, 4
      // Predicated region
      $region85: #{tpu_custom_call.1} parent=5 // pred_check
        %p531 = pneg %p530
      $region86: #{tpu_custom_call.1} parent=5 // pred_check_branch
        %533 = sbr.rel (%p531) target = $region88
      $region87: #{tpu_custom_call.1} parent=5 // pred_region
        // Predicated region
        $region89: #{tpu_custom_call.1} parent=87 // pred_check
          %p534 = pneg %p51
        $region90: #{tpu_custom_call.1} parent=87 // pred_check_branch
          %536 = sbr.rel (%p534) target = $region92
        $region91: #{tpu_custom_call.1} parent=87 // pred_region
          %s537 = sand.u32 %s41, 1
          %s538 = scalar_lea.sflag [#allocation3], %s537
          %s539 = sand.u32 %s41, 1
          %s540 = smul.addr %s539, 8
          %s541 = scalar_lea.vmem [#allocation2], %s540
          %543 = vsyncadd %s538, 0
          %s544 = smul.addr %s31, 8
          %s545 = scalar_lea.hbm %s0, %s544
          %s547 = sshll.u32 %s545, 4
          %s548 = int_to_ptr.hbm [resolvable:$true] %s547
          %s549 = sshll.u32 %s541, 4
          %s550 = int_to_ptr.vmem [resolvable:$true] %s549
          %552 = dma.hbm_to_vmem [thread:$0]  %s548, 128, %s550, %s538
        $region92: #{tpu_custom_call.1} parent=87 // pred_fallthru
          _
      $region88: #{tpu_custom_call.1} parent=5 // pred_fallthru
        _
      %p553 = scmp.le.s32.totalorder 1, %s31
      %p554 = scmp.lt.s32.totalorder %s31, 5
      %p555 = pnand %p553, %p554
      %p556 = pneg %p555
      // Predicated region
      $region93: #{tpu_custom_call.1} parent=5 // pred_check
        _
      $region94: #{tpu_custom_call.1} parent=5 // pred_check_branch
        %558 = sbr.rel (%p555) target = $region96
      $region95: #{tpu_custom_call.1} parent=5 // pred_region
        %s559 = ssub.s32 %s31, 1
        %s560 = sand.u32 %s44, 1
        %s561 = scalar_lea.sflag [#allocation3], %s560
        %s562 = sand.u32 %s44, 1
        %s563 = smul.addr %s562, 8
        %s564 = scalar_lea.vmem [#allocation2], %s563
        // Predicated region
        $region97: #{tpu_custom_call.1} parent=95 // pred_check
          %p565 = pneg %p57
        $region98: #{tpu_custom_call.1} parent=95 // pred_check_branch
          %567 = sbr.rel (%p565) target = $region100
        $region99: #{tpu_custom_call.1} parent=95 // pred_region
          %569 = dma.done %s561, 128
        $region100: #{tpu_custom_call.1} parent=95 // pred_fallthru
          _
        %s570 = sand.u32 %s44, 1
        %s571 = scalar_lea.sflag [#allocation3], %s570
        %s572 = sand.u32 %s44, 1
        %s573 = smul.addr %s572, 8
        %s574 = scalar_lea.vmem [#allocation2], %s573
        %p575 = pneg %p57
        %p576 = pneg %p54
        %p577 = pneg %p78
        %p578 = pneg %p75
        %p579 = pneg %p99
        %p580 = pneg %p96
        %p581 = pneg %p120
        %p582 = pneg %p117
        %p583 = pneg %p141
        %p584 = pneg %p138
        %p585 = pneg %p162
        %p586 = pneg %p159
        %p587 = pneg %p183
        %p588 = pneg %p180
        %p589 = pneg %p204
        %p590 = pneg %p201
        %p591 = pneg %p225
        %p592 = pneg %p222
        %p593 = pneg %p246
        %p594 = pneg %p243
        %p595 = pneg %p267
        %p596 = pneg %p264
        %p597 = pneg %p288
        %p598 = pneg %p285
        %p599 = pneg %p309
        %p600 = pneg %p306
        %p601 = pneg %p330
        %p602 = pneg %p327
        %p603 = pneg %p351
        %p604 = pneg %p348
        %p605 = pneg %p372
        %p606 = pneg %p369
        %p607 = pneg %p393
        %p608 = pneg %p390
        %p609 = pneg %p414
        %p610 = pneg %p411
        %p611 = pneg %p435
        %p612 = pneg %p432
        %p613 = pneg %p461
        %p614 = pneg %p458
        %s615 = sand.u32 %s448, 1
        %s616 = scalar_lea.sflag [#allocation4], %s615
        %s617 = sand.u32 %s448, 1
        %s618 = smul.addr %s617, 8
        %s619 = scalar_lea.vmem [#allocation5], %s618
        %v621 = vld [vmem:[%s564] sm:$0xff]
        %v622 = vld [vmem:[%s1] sm:$0x1]
        %v623 = vld [vmem:[%s2] sm:$0x1]
        %vm624 = vcmask 261120
        %v625 = vsel %vm624, %v621, 0.0
        %626 = vadd.xlane.f32.xlu0 %v625
        %v627 = vpop.xlane.xlu0 %626
        %v628 = vrcp.pop 32.0
        %v629 = vmul.f32 32.0, %v628
        %v630 = vsub.f32 1.0, %v629
        %v631 = vmul.f32 %v628, %v630
        %v632 = vadd.f32 %v628, %v631
        %vm633 = vweird.f32 %v628
        %v634 = vsel %vm633, %v628, %v632
        %v635 = vmul.f32 %v627, %v634
        %v636 = vmul.f32 %v621, %v621
        %v637 = vsel %vm624, %v636, 0.0
        %638 = vadd.xlane.f32.xlu0 %v637
        %v639 = vpop.xlane.xlu0 %638
        %v640 = vmul.f32 %v639, %v634
        %v641 = vmul.f32 %v635, %v635
        %v642 = vsub.f32 %v640, %v641
        %v643 = vsub.f32 %v621, %v635
        %v644 = vadd.f32 %v642, 1e-05
        %v645 = vrsqrt.pop %v644
        %v646 = vmul.f32 %v645, %v644
        %v647 = vmul.f32 %v646, %v645
        %v648 = vmul.f32 0.5, %v647
        %v649 = vsub.f32 1.5, %v648
        %v650 = vmul.f32 %v645, %v649
        %vm651 = vweird.f32 %v644
        %vm652 = vweird.f32 %v645
        %vm653 = vmor %vm651, %vm652
        %v654 = vsel %vm653, %v645, %v650
        %v656 = vperm.slane %v622, 0
        %v658 = vmul.f32 %v654, %v656
        %v659 = vmul.f32 %v643, %v658
        %v661 = vperm.slane %v623, 0
        %v663 = vadd.f32 %v659, %v661
        %v664 = vpack.c.bf16 %v663, %v663
        %v665 = vld [vmem:[%s5] sm:$0xf]
        %v666 = vld [vmem:[%s5 + $0x4] sm:$0xf]
        %v667 = vld [vmem:[%s5 + $0x8] sm:$0xf]
        %v668 = vld [vmem:[%s5 + $0xc] sm:$0xf]
        %v669 = vld [vmem:[%s6] sm:$0x1]
        %v671 = vperm.slane %v669, 0
        %v677 = vunpack.c.l.b16 %v665
        %v678 = vunpack.c.l.b16 %v666
        %v679 = vunpack.c.l.b16 %v667
        %v680 = vunpack.c.l.b16 %v668
        %v681 = vpack.c.b16 %v678, %v677
        %v682 = vpack.c.b16 %v680, %v679
        %v686 = vsel %vm624, %v664, 0
        %688 = vmatpush.bf16.msra.mxu0 0
        %689 = vmatpush.bf16.msra.mxu0 0
        %690 = vmatpush.bf16.msra.mxu0 0
        %691 = vmatpush.bf16.msra.mxu0 0
        %692 = vmatpush.bf16.msra.mxu0 0
        %693 = vmatpush.bf16.msra.mxu0 0
        %694 = vmatpush.bf16.msra.mxu0 %v682
        %695 = vmatpush.bf16.msra.mxu0 %v681
        %696 = vmatmul.bf16.gmra.mxu0 %v686
        %v697 = vpop.f32.mrf.mxu0
        %v698 = vadd.f32 %v671, %v697
        %v699 = vpop.f32.mrf.mxu0
        %700 = vdwg.mxu0
        %v701 = vld [vmem:[%s7] sm:$0xf]
        %v702 = vld [vmem:[%s7 + $0x4] sm:$0xf]
        %v703 = vld [vmem:[%s7 + $0x8] sm:$0xf]
        %v704 = vld [vmem:[%s7 + $0xc] sm:$0xf]
        %v705 = vld [vmem:[%s8] sm:$0x1]
        %v707 = vperm.slane %v705, 0
        %v713 = vunpack.c.l.b16 %v701
        %v714 = vunpack.c.l.b16 %v702
        %v715 = vunpack.c.l.b16 %v703
        %v716 = vunpack.c.l.b16 %v704
        %v717 = vpack.c.b16 %v714, %v713
        %v718 = vpack.c.b16 %v716, %v715
        %721 = vmatpush.bf16.msra.mxu0 0
        %722 = vmatpush.bf16.msra.mxu0 0
        %723 = vmatpush.bf16.msra.mxu0 0
        %724 = vmatpush.bf16.msra.mxu0 0
        %725 = vmatpush.bf16.msra.mxu0 0
        %726 = vmatpush.bf16.msra.mxu0 0
        %727 = vmatpush.bf16.msra.mxu0 %v718
        %728 = vmatpush.bf16.msra.mxu0 %v717
        %729 = vmatmul.bf16.gmra.mxu0 %v686
        %v730 = vpop.f32.mrf.mxu0
        %v731 = vadd.f32 %v707, %v730
        %v732 = vpop.f32.mrf.mxu0
        %733 = vdwg.mxu0
        %v734 = vld [vmem:[%s9] sm:$0xf]
        %v735 = vld [vmem:[%s9 + $0x4] sm:$0xf]
        %v736 = vld [vmem:[%s9 + $0x8] sm:$0xf]
        %v737 = vld [vmem:[%s9 + $0xc] sm:$0xf]
        %v738 = vld [vmem:[%s10] sm:$0x1]
        %v743 = vunpack.c.l.b16 %v734
        %v744 = vunpack.c.l.b16 %v735
        %v745 = vunpack.c.l.b16 %v736
        %v746 = vunpack.c.l.b16 %v737
        %v747 = vpack.c.b16 %v744, %v743
        %v748 = vpack.c.b16 %v746, %v745
        %751 = vmatpush.bf16.msra.mxu0 0
        %752 = vmatpush.bf16.msra.mxu0 0
        %753 = vmatpush.bf16.msra.mxu0 0
        %754 = vmatpush.bf16.msra.mxu0 0
        %755 = vmatpush.bf16.msra.mxu0 0
        %756 = vmatpush.bf16.msra.mxu0 0
        %757 = vmatpush.bf16.msra.mxu0 %v748
        %758 = vmatpush.bf16.msra.mxu0 %v747
        %759 = vmatmul.bf16.gmra.mxu0 %v686
        %v760 = vpop.f32.mrf.mxu0
        %v761 = vadd.f32 %v738, %v760
        %v762 = vpop.f32.mrf.mxu0
        %763 = vdwg.mxu0
        %v764 = vperm.slane %v761, 0
        %v765 = vmul.f32 %v698, %v764
        %v766 = vpack.c.bf16 %v765, %v765
        %v767 = vld [vmem:[%s17] sm:$0xf]
        %v768 = vld [vmem:[%s17 + $0x4] sm:$0xf]
        %v769 = vld [vmem:[%s17 + $0x8] sm:$0xf]
        %v770 = vld [vmem:[%s17 + $0xc] sm:$0xf]
        %v775 = vunpack.c.l.b16 %v767
        %v776 = vunpack.c.l.b16 %v768
        %v777 = vunpack.c.l.b16 %v769
        %v778 = vunpack.c.l.b16 %v770
        %v779 = vpack.c.b16 %v776, %v775
        %v780 = vpack.c.b16 %v778, %v777
        %v784 = vsel %vm624, %v766, 0
        %786 = vmatpush.bf16.msra.mxu0 0
        %787 = vmatpush.bf16.msra.mxu0 0
        %788 = vmatpush.bf16.msra.mxu0 0
        %789 = vmatpush.bf16.msra.mxu0 0
        %790 = vmatpush.bf16.msra.mxu0 0
        %791 = vmatpush.bf16.msra.mxu0 0
        %792 = vmatpush.bf16.msra.mxu0 %v780
        %793 = vmatpush.bf16.msra.mxu0 %v779
        %794 = vmatmul.bf16.gmra.mxu0 %v784
        %v795 = vpop.f32.mrf.mxu0
        %v796 = vadd.f32 0.0, %v795
        %v797 = vpop.f32.mrf.mxu0
        %798 = vdwg.mxu0
        %vm799 = vcmask 31744
        %v800 = vsel %vm799, %v796, -inf
        %v801 = vrot.slane %v800, 4
        %v802 = vmax.f32 %v800, %v801
        %v803 = vrot.slane %v802, 2
        %v804 = vmax.f32 %v802, %v803
        %v805 = vrot.slane %v804, 1
        %v806 = vmax.f32 %v804, %v805
        %v807 = vsub.f32 %v796, %v806
        %v808 = vmul.f32 %v807, 1.442695
        %v809 = vpow.pop %v808
        %v810 = vsel %vm799, %v809, 0.0
        %v811 = vrot.slane %v810, 4
        %v812 = vadd.f32 %v810, %v811
        %v813 = vrot.slane %v812, 2
        %v814 = vadd.f32 %v812, %v813
        %v815 = vrot.slane %v814, 1
        %v816 = vadd.f32 %v814, %v815
        %v817 = vrcp.pop %v816
        %v818 = vmul.f32 %v816, %v817
        %v819 = vsub.f32 1.0, %v818
        %v820 = vmul.f32 %v817, %v819
        %v821 = vadd.f32 %v817, %v820
        %vm822 = vweird.f32 %v816
        %vm823 = vweird.f32 %v817
        %vm824 = vmor %vm822, %vm823
        %v825 = vsel %vm824, %v817, %v821
        %v826 = vand.u32 2147483647, %v816
        %vm827 = vcmp.eq.f32.partialorder %v826, 8.507059e+37
        %v828 = vand.u32 %v816, 2147483648
        %v829 = vor.u32 1.1754944e-38, %v828
        %v830 = vsel %vm827, %v829, %v825
        %v831 = vmul.f32 1.0, %v830
        %v832 = vmul.f32 %v809, %v831
        %v833 = vpack.c.bf16 %v832, %v832
        %v834 = vld [vmem:[%s18] sm:$0x3]
        %v836 = vsel %vm799, %v833, 0
        %vm838 = vcmask 1041408
        %v840 = vsel %vm838, %v834, 0
        %842 = vmatpush.bf16.msra.mxu0 0
        %843 = vmatpush.bf16.msra.mxu0 0
        %844 = vmatpush.bf16.msra.mxu0 0
        %845 = vmatpush.bf16.msra.mxu0 0
        %846 = vmatpush.bf16.msra.mxu0 0
        %847 = vmatpush.bf16.msra.mxu0 0
        %848 = vmatpush.bf16.msra.mxu0 0
        %849 = vmatpush.bf16.msra.mxu0 %v840
        %850 = vmatmul.bf16.gmra.mxu0 %v836
        %v851 = vpop.f32.mrf.mxu0
        %v852 = vadd.f32 0.0, %v851
        %v853 = vpop.f32.mrf.mxu0
        %854 = vdwg.mxu0
        %v855 = vmul.f32 %v852, %v731
        %v856 = vsel %vm624, %v855, 0.0
        %v857 = vrot.slane %v856, 4
        %v858 = vadd.f32 %v856, %v857
        %v859 = vrot.slane %v858, 2
        %v860 = vadd.f32 %v858, %v859
        %v861 = vrot.slane %v860, 1
        %v862 = vadd.f32 %v860, %v861
        %v863 = vpack.c.bf16 %v862, %v862
        %v864 = vld [vmem:[%s11] sm:$0xf]
        %v865 = vld [vmem:[%s11 + $0x4] sm:$0xf]
        %v866 = vld [vmem:[%s11 + $0x8] sm:$0xf]
        %v867 = vld [vmem:[%s11 + $0xc] sm:$0xf]
        %v868 = vld [vmem:[%s12] sm:$0x1]
        %v873 = vunpack.c.l.b16 %v864
        %v874 = vunpack.c.l.b16 %v865
        %v875 = vunpack.c.l.b16 %v866
        %v876 = vunpack.c.l.b16 %v867
        %v877 = vpack.c.b16 %v874, %v873
        %v878 = vpack.c.b16 %v876, %v875
        %v882 = vsel %vm624, %v863, 0
        %884 = vmatpush.bf16.msra.mxu0 0
        %885 = vmatpush.bf16.msra.mxu0 0
        %886 = vmatpush.bf16.msra.mxu0 0
        %887 = vmatpush.bf16.msra.mxu0 0
        %888 = vmatpush.bf16.msra.mxu0 0
        %889 = vmatpush.bf16.msra.mxu0 0
        %890 = vmatpush.bf16.msra.mxu0 %v878
        %891 = vmatpush.bf16.msra.mxu0 %v877
        %892 = vmatmul.bf16.gmra.mxu0 %v882
        %v893 = vpop.f32.mrf.mxu0
        %v894 = vadd.f32 %v868, %v893
        %v895 = vpop.f32.mrf.mxu0
        %896 = vdwg.mxu0
        %v897 = vadd.f32 %v621, %v894
        %v898 = vld [vmem:[%s3] sm:$0x1]
        %v899 = vld [vmem:[%s4] sm:$0x1]
        %vm900 = vcmask 253952
        %v901 = vsel %vm900, %v897, 0.0
        %902 = vadd.xlane.f32.xlu0 %v901
        %v903 = vpop.xlane.xlu0 %902
        %v904 = vmul.f32 %v903, %v634
        %v905 = vmul.f32 %v897, %v897
        %v906 = vsel %vm900, %v905, 0.0
        %907 = vadd.xlane.f32.xlu0 %v906
        %v908 = vpop.xlane.xlu0 %907
        %v909 = vmul.f32 %v908, %v634
        %v910 = vmul.f32 %v904, %v904
        %v911 = vsub.f32 %v909, %v910
        %v912 = vsub.f32 %v897, %v904
        %v913 = vadd.f32 %v911, 1e-05
        %v914 = vrsqrt.pop %v913
        %v915 = vmul.f32 %v914, %v913
        %v916 = vmul.f32 %v915, %v914
        %v917 = vmul.f32 0.5, %v916
        %v918 = vsub.f32 1.5, %v917
        %v919 = vmul.f32 %v914, %v918
        %vm920 = vweird.f32 %v913
        %vm921 = vweird.f32 %v914
        %vm922 = vmor %vm920, %vm921
        %v923 = vsel %vm922, %v914, %v919
        %v924 = vmul.f32 %v923, %v898
        %v925 = vmul.f32 %v912, %v924
        %v926 = vadd.f32 %v925, %v899
        %v927 = vpack.c.bf16 %v926, %v926
        %v928 = vld [vmem:[%s13] sm:$0xf]
        %v929 = vld [vmem:[%s13 + $0x4] sm:$0xf]
        %v930 = vld [vmem:[%s13 + $0x8] sm:$0xf]
        %v931 = vld [vmem:[%s13 + $0xc] sm:$0xf]
        %v932 = vld [vmem:[%s14] sm:$0x1]
        %v937 = vunpack.c.l.b16 %v928
        %v938 = vunpack.c.l.b16 %v929
        %v939 = vunpack.c.l.b16 %v930
        %v940 = vunpack.c.l.b16 %v931
        %v941 = vpack.c.b16 %v938, %v937
        %v942 = vpack.c.b16 %v940, %v939
        %v946 = vsel %vm624, %v927, 0
        %948 = vmatpush.bf16.msra.mxu0 0
        %949 = vmatpush.bf16.msra.mxu0 0
        %950 = vmatpush.bf16.msra.mxu0 0
        %951 = vmatpush.bf16.msra.mxu0 0
        %952 = vmatpush.bf16.msra.mxu0 0
        %953 = vmatpush.bf16.msra.mxu0 0
        %954 = vmatpush.bf16.msra.mxu0 %v942
        %955 = vmatpush.bf16.msra.mxu0 %v941
        %956 = vmatmul.bf16.gmra.mxu0 %v946
        %v957 = vpop.f32.mrf.mxu0
        %v958 = vadd.f32 %v932, %v957
        %v959 = vpop.f32.mrf.mxu0
        %960 = vdwg.mxu0
        %v961 = vmul.f32 %v958, 0.5
        %v962 = vmul.f32 %v958, 0.70710677
        %v963 = vmul.f32 %v962, %v962
        %v964 = vmin.f32 16.0, %v963
        %v965 = vmul.f32 %v964, 2.1237322e-06
        %v966 = vadd.f32 %v965, 0.00028619796
        %v967 = vmul.f32 %v964, %v966
        %v968 = vadd.f32 %v967, 0.0036580483
        %v969 = vmul.f32 %v964, %v968
        %v970 = vadd.f32 %v969, 0.05243302
        %v971 = vmul.f32 %v964, %v970
        %v972 = vadd.f32 %v971, 0.18741608
        %v973 = vmul.f32 %v964, %v972
        %v974 = vadd.f32 %v973, 1.1283791
        %v975 = vmul.f32 %v962, %v974
        %v976 = vmul.f32 %v964, 3.8918573e-05
        %v977 = vadd.f32 %v976, 0.001143296
        %v978 = vmul.f32 %v964, %v977
        %v979 = vadd.f32 %v978, 0.014752088
        %v980 = vmul.f32 %v964, %v979
        %v981 = vadd.f32 %v980, 0.112945676
        %v982 = vmul.f32 %v964, %v981
        %v983 = vadd.f32 %v982, 0.4994258
        %v984 = vmul.f32 %v964, %v983
        %v985 = vadd.f32 %v984, 1.0
        %v986 = vrcp.pop %v985
        %v987 = vmul.f32 %v985, %v986
        %v988 = vsub.f32 1.0, %v987
        %v989 = vmul.f32 %v986, %v988
        %v990 = vadd.f32 %v986, %v989
        %vm991 = vweird.f32 %v985
        %vm992 = vweird.f32 %v986
        %vm993 = vmor %vm991, %vm992
        %v994 = vsel %vm993, %v986, %v990
        %v995 = vand.u32 2147483647, %v985
        %vm996 = vcmp.eq.f32.partialorder %v995, 8.507059e+37
        %v997 = vand.u32 %v985, 2147483648
        %v998 = vor.u32 1.1754944e-38, %v997
        %v999 = vsel %vm996, %v998, %v994
        %v1000 = vmul.f32 %v975, %v999
        %v1001 = vmin.f32 %v1000, 1.0
        %v1002 = vmax.f32 %v1001, -1.0
        %v1003 = vadd.f32 %v1002, 1.0
        %v1004 = vmul.f32 %v961, %v1003
        %v1005 = vpack.c.bf16 %v1004, %v1004
        %v1006 = vld [vmem:[%s15] sm:$0xf]
        %v1007 = vld [vmem:[%s15 + $0x4] sm:$0xf]
        %v1008 = vld [vmem:[%s15 + $0x8] sm:$0xf]
        %v1009 = vld [vmem:[%s15 + $0xc] sm:$0xf]
        %v1010 = vld [vmem:[%s15 + $0x10] sm:$0xf]
        %v1011 = vld [vmem:[%s15 + $0x14] sm:$0xf]
        %v1012 = vld [vmem:[%s15 + $0x18] sm:$0xf]
        %v1013 = vld [vmem:[%s15 + $0x1c] sm:$0xf]
        %v1014 = vld [vmem:[%s15 + $0x20] sm:$0xf]
        %v1015 = vld [vmem:[%s15 + $0x24] sm:$0xf]
        %v1016 = vld [vmem:[%s15 + $0x28] sm:$0xf]
        %v1017 = vld [vmem:[%s15 + $0x2c] sm:$0xf]
        %v1018 = vld [vmem:[%s15 + $0x30] sm:$0xf]
        %v1019 = vld [vmem:[%s15 + $0x34] sm:$0xf]
        %v1020 = vld [vmem:[%s15 + $0x38] sm:$0xf]
        %v1021 = vld [vmem:[%s15 + $0x3c] sm:$0xf]
        %v1038 = vunpack.c.l.b16 %v1006
        %v1039 = vunpack.c.l.b16 %v1007
        %v1040 = vunpack.c.l.b16 %v1008
        %v1041 = vunpack.c.l.b16 %v1009
        %v1042 = vunpack.c.l.b16 %v1010
        %v1043 = vunpack.c.l.b16 %v1011
        %v1044 = vunpack.c.l.b16 %v1012
        %v1045 = vunpack.c.l.b16 %v1013
        %v1046 = vunpack.c.l.b16 %v1014
        %v1047 = vunpack.c.l.b16 %v1015
        %v1048 = vunpack.c.l.b16 %v1016
        %v1049 = vunpack.c.l.b16 %v1017
        %v1050 = vunpack.c.l.b16 %v1018
        %v1051 = vunpack.c.l.b16 %v1019
        %v1052 = vunpack.c.l.b16 %v1020
        %v1053 = vunpack.c.l.b16 %v1021
        %v1054 = vpack.c.b16 %v1039, %v1038
        %v1055 = vpack.c.b16 %v1041, %v1040
        %v1056 = vpack.c.b16 %v1043, %v1042
        %v1057 = vpack.c.b16 %v1045, %v1044
        %v1058 = vpack.c.b16 %v1047, %v1046
        %v1059 = vpack.c.b16 %v1049, %v1048
        %v1060 = vpack.c.b16 %v1051, %v1050
        %v1061 = vpack.c.b16 %v1053, %v1052
        %1070 = vmatpush.bf16.msra.mxu0 %v1061
        %1071 = vmatpush.bf16.msra.mxu0 %v1060
        %1072 = vmatpush.bf16.msra.mxu0 %v1059
        %1073 = vmatpush.bf16.msra.mxu0 %v1058
        %1074 = vmatpush.bf16.msra.mxu0 %v1057
        %1075 = vmatpush.bf16.msra.mxu0 %v1056
        %1076 = vmatpush.bf16.msra.mxu0 %v1055
        %1077 = vmatpush.bf16.msra.mxu0 %v1054
        %1078 = vmatmul.bf16.gmra.mxu0 %v1005
        %v1079 = vpop.f32.mrf.mxu0
        %v1080 = vadd.f32 0.0, %v1079
        %v1081 = vpop.f32.mrf.mxu0
        %1082 = vdwg.mxu0
        %v1083 = vadd.f32 %v897, %v1080
        %v1084 = vld [vmem:[%s16] sm:$0x1]
        %v1085 = vadd.f32 %v1083, %v1084
        %1086 = vst.msk [vmem:[%s619] sm:$0xff] %vm624, %v621
        %1087 = vst.msk [vmem:[%s619] sm:$0x1] %vm900, %v1085
        %s1088 = sand.u32 %s448, 1
        %s1089 = scalar_lea.sflag [#allocation4], %s1088
        %s1090 = sand.u32 %s448, 1
        %s1091 = smul.addr %s1090, 8
        %s1092 = scalar_lea.vmem [#allocation5], %s1091
        // Predicated region
        $region101: #{tpu_custom_call.1} parent=95 // pred_check
          %p1093 = pneg %p458
        $region102: #{tpu_custom_call.1} parent=95 // pred_check_branch
          %1095 = sbr.rel (%p1093) target = $region104
        $region103: #{tpu_custom_call.1} parent=95 // pred_region
          %1097 = vsyncadd %s1089, 0
          %s1098 = smul.addr %s36, 8
          %s1099 = scalar_lea.hbm %s19, %s1098
          %s1101 = sshll.u32 %s1092, 4
          %s1102 = int_to_ptr.vmem [resolvable:$true] %s1101
          %s1103 = sshll.u32 %s1099, 4
          %s1104 = int_to_ptr.hbm [resolvable:$true] %s1103
          %1106 = dma.vmem_to_hbm [thread:$0]  %s1102, 128, %s1104, %s1089
        $region104: #{tpu_custom_call.1} parent=95 // pred_fallthru
          _
      $region96: #{tpu_custom_call.1} parent=5 // pred_fallthru
        _
      %p1107 = scmp.le.s32.totalorder 2, %s31
      // Predicated region
      $region105: #{tpu_custom_call.1} parent=5 // pred_check
        %p1108 = pneg %p1107
      $region106: #{tpu_custom_call.1} parent=5 // pred_check_branch
        %1110 = sbr.rel (%p1108) target = $region108
      $region107: #{tpu_custom_call.1} parent=5 // pred_region
        %s1111 = ssub.s32 %s31, 2
        // Predicated region
        $region109: #{tpu_custom_call.1} parent=107 // pred_check
          %p1112 = pneg %p464
        $region110: #{tpu_custom_call.1} parent=107 // pred_check_branch
          %1114 = sbr.rel (%p1112) target = $region112
        $region111: #{tpu_custom_call.1} parent=107 // pred_region
          %s1115 = sand.u32 %s449, 1
          %s1116 = scalar_lea.sflag [#allocation4], %s1115
          %s1117 = sand.u32 %s449, 1
          %s1118 = smul.addr %s1117, 8
          %s1119 = scalar_lea.vmem [#allocation5], %s1118
          %1121 = dma.done %s1116, 128
        $region112: #{tpu_custom_call.1} parent=107 // pred_fallthru
          _
      $region108: #{tpu_custom_call.1} parent=5 // pred_fallthru
        _
    $region6: #{tpu_custom_call.1} parent=1 // loop_footer
      %s35 = sadd.s32 1, %s31
    $region7: #{tpu_custom_call.1} parent=1 // loop_footer_branch
      %30 = sbr.rel target = $region3
    $region8: #{tpu_custom_call.1} parent=1 // loop_exit
      _
    %1122 = vsyncpa [#allocation3], 1
    %s1123 = scalar_lea.sflag [#allocation3], 1
    %1124 = vsyncpa %s1123, 1
    %1125 = vsyncpa [#allocation4], 1
    %s1126 = scalar_lea.sflag [#allocation4], 1
    %1127 = vsyncpa %s1126, 1

</llo_original>
